<compile_context>
chip_gen: v7x
topology: tpu7x:2x2x1
jax: 0.10.0
libtpu: 0.0.40
codegen_flags: <defaults>
</compile_context>

<pallas_src>
import functools
import math

import jax
import jax.numpy as jnp
from jax.experimental import pallas as pl
from jax.experimental.pallas import tpu as pltpu


def _tile(n, cap):
    """Largest divisor of n that is <= cap."""
    t = min(n, cap)
    while n % t:
        t -= 1
    return t


def _vmem_limit_bytes():
    # ~48 MiB on v7x (64 MiB physical VMEM), ~96 MiB on v5e/v6e (128 MiB).
    try:
        cap = pltpu.get_tpu_info().vmem_capacity_bytes
    except Exception:
        cap = 128 * 1024 * 1024
    return int(min(cap * 3 // 4, 96 * 1024 * 1024))


# ---------------------------------------------------------------------------
# Kernel 1: fused QKV projection   qkv = x @ [Wq*scale | Wk | Wv]
# ---------------------------------------------------------------------------
def _qkv_proj_kernel(x_ref, w_ref, qkv_ref):
    x2 = x_ref[0]                                     # (tt, d_in)   bf16
    qkv = jnp.dot(x2, w_ref[...], preferred_element_type=jnp.float32)
    qkv_ref[0] = qkv.astype(qkv_ref.dtype)            # (tt, tn)


# ---------------------------------------------------------------------------
# Kernel 2: flash attention (online softmax, causal, kv = reduction axis)
# ---------------------------------------------------------------------------
def _flash_attn_kernel(q_ref, k_ref, v_ref, o_ref, m_sc, l_sc, acc_sc):
    # TODO(synk): for head_dim < 128, fold several heads per MXU call (or pad
    #             head_dim) to recover full MXU K/N width.
    tq = q_ref.shape[2]
    tk = k_ref.shape[2]
    ki = pl.program_id(3)
    nk = pl.num_programs(3)
    q_start = pl.program_id(2) * tq
    k_start = ki * tk

    @pl.when(ki == 0)
    def _init():
        m_sc[...] = jnp.full_like(m_sc, -jnp.inf)
        l_sc[...] = jnp.zeros_like(l_sc)
        acc_sc[...] = jnp.zeros_like(acc_sc)

    # Causal tile skip: a kv tile whose first key is beyond the last query of
    # this q tile contributes nothing (~2x fewer MXU flops at long T).
    @pl.when(k_start < q_start + tq)
    def _update():
        q = q_ref[0, 0]                               # (tq, hd) bf16 (pre-scaled)
        k = k_ref[0, 0]                               # (tk, hd) bf16
        v = v_ref[0, 0]                               # (tk, hd) bf16
        # scores: contract head_dim of q and k -> (tq, tk), f32 accumulation.
        s = jax.lax.dot_general(q, k, (((1,), (1,)), ((), ())),
                                preferred_element_type=jnp.float32)
        # Finite additive causal mask (no exp(-inf - -inf) NaN risk).
        row = q_start + jax.lax.broadcasted_iota(jnp.int32, (tq, tk), 0)
        col = k_start + jax.lax.broadcasted_iota(jnp.int32, (tq, tk), 1)
        s = jnp.where(col > row, jnp.float32(-1e30), s)

        m_prev = m_sc[...]
        m_new = jnp.maximum(m_prev, jnp.max(s, axis=-1, keepdims=True))
        alpha = jnp.exp(m_prev - m_new)               # f32 on EUP
        p = jnp.exp(s - m_new)                        # f32 on EUP
        l_sc[...] = alpha * l_sc[...] + jnp.sum(p, axis=-1, keepdims=True)
        acc_sc[...] = alpha * acc_sc[...] + jnp.dot(
            p.astype(v.dtype), v, preferred_element_type=jnp.float32)
        m_sc[...] = m_new

    @pl.when(ki == nk - 1)
    def _finalize():
        inv_l = pl.reciprocal(l_sc[...], approx=True)
        o_ref[0, 0] = (acc_sc[...] * inv_l).astype(o_ref.dtype)


# ---------------------------------------------------------------------------
# Kernel 3: output projection   out = ctx @ Wo + bo  (lane-dense N)
# ---------------------------------------------------------------------------
def _out_proj_kernel(ctx_ref, wo_ref, bo_ref, o_ref):
    ctx = ctx_ref[0]                                  # (tq, d_out) bf16
    out = jnp.dot(ctx, wo_ref[...], preferred_element_type=jnp.float32)
    o_ref[0] = (out + bo_ref[...]).astype(o_ref.dtype)


def multi_head_attention(x, wq, wk, wv, wo, bo, *, num_heads,
                         q_block=256, kv_block=256, n_block=512):
    """Causal MHA forward.  x:(b,T,d_in); wq/wk/wv:(d_in,d_out);
    wo:(d_out,d_out); bo:(d_out,).  Returns (b,T,d_out) in x.dtype."""
    b, T, d_in = x.shape
    d_out = wq.shape[1]
    assert d_out % num_heads == 0
    hd = d_out // num_heads
    scale = 1.0 / math.sqrt(hd)

    tq = _tile(T, q_block)
    tk = _tile(T, kv_block)
    nq, nk = T // tq, T // tk
    vmem_limit = _vmem_limit_bytes()

    # ---- parameter prep (in a real model, do this once at init time) ----
    w_qkv = jnp.concatenate([wq * scale, wk, wv], axis=1).astype(jnp.bfloat16)
    d_out_pad = d_out if d_out % 128 == 0 else ((d_out + 127) // 128) * 128
    if d_out_pad != d_out:
        wo_p = jnp.zeros((d_out, d_out_pad), jnp.bfloat16)
        wo_p = wo_p.at[:, :d_out].set(wo.astype(jnp.bfloat16))
        bo_p = jnp.zeros((1, d_out_pad), jnp.float32)
        bo_p = bo_p.at[0, :d_out].set(bo.astype(jnp.float32))
    else:
        wo_p = wo.astype(jnp.bfloat16)
        bo_p = bo.astype(jnp.float32).reshape(1, d_out)

    x_bf = x.astype(jnp.bfloat16)     # bf16 MXU operands, f32 accumulation

    # ---- 1) fused QKV projection ----------------------------------------
    tn = _tile(3 * d_out, n_block)
    nn = (3 * d_out) // tn
    qkv = pl.pallas_call(
        _qkv_proj_kernel,
        out_shape=jax.ShapeDtypeStruct((b, T, 3 * d_out), jnp.bfloat16),
        grid_spec=pltpu.PrefetchScalarGridSpec(
            num_scalar_prefetch=0,
            grid=(b, nq, nn),
            in_specs=[
                pl.BlockSpec((1, tq, d_in), lambda bi, ti, ni: (bi, ti, 0)),
                # Constant in (bi, ti): weight tile is not re-DMA'd per step.
                pl.BlockSpec((d_in, tn), lambda bi, ti, ni: (0, ni)),
            ],
            out_specs=pl.BlockSpec((1, tq, tn),
                                   lambda bi, ti, ni: (bi, ti, ni)),
        ),
        compiler_params=pltpu.CompilerParams(
            dimension_semantics=("parallel", "parallel", "parallel"),
            vmem_limit_bytes=vmem_limit),
    )(x_bf, w_qkv)

    # ---- layout plumbing (XLA, not compute): token-major -> head-major ---
    qkv_hm = jnp.transpose(qkv.reshape(b, T, 3, num_heads, hd),
                           (2, 0, 3, 1, 4))           # (3, b, H, T, hd)
    q_hm, k_hm, v_hm = qkv_hm[0], qkv_hm[1], qkv_hm[2]

    # ---- 2) flash attention ----------------------------------------------
    ctx_hm = pl.pallas_call(
        _flash_attn_kernel,
        out_shape=jax.ShapeDtypeStruct((b, num_heads, T, hd), jnp.bfloat16),
        grid_spec=pltpu.PrefetchScalarGridSpec(
            num_scalar_prefetch=0,
            grid=(b, num_heads, nq, nk),
            in_specs=[
                pl.BlockSpec((1, 1, tq, hd),
                             lambda bi, h, qi, ki: (bi, h, qi, 0)),
                pl.BlockSpec((1, 1, tk, hd),
                             lambda bi, h, qi, ki: (bi, h, ki, 0)),
                pl.BlockSpec((1, 1, tk, hd),
                             lambda bi, h, qi, ki: (bi, h, ki, 0)),
            ],
            out_specs=pl.BlockSpec((1, 1, tq, hd),
                                   lambda bi, h, qi, ki: (bi, h, qi, 0)),
            scratch_shapes=[
                pltpu.VMEM((tq, 1), jnp.float32),     # running max  m
                pltpu.VMEM((tq, 1), jnp.float32),     # running sum  l
                pltpu.VMEM((tq, hd), jnp.float32),    # output accumulator
            ]),
        compiler_params=pltpu.CompilerParams(
            dimension_semantics=("parallel", "parallel", "parallel",
                                 "arbitrary"),
            vmem_limit_bytes=vmem_limit),
    )(q_hm, k_hm, v_hm)

    # ---- layout plumbing: head-major -> token-major -----------------------
    ctx = jnp.transpose(ctx_hm, (0, 2, 1, 3)).reshape(b, T, d_out)

    # ---- 3) output projection ---------------------------------------------
    tno = _tile(d_out_pad, n_block)
    nno = d_out_pad // tno
    out_p = pl.pallas_call(
        _out_proj_kernel,
        out_shape=jax.ShapeDtypeStruct((b, T, d_out_pad), x.dtype),
        grid_spec=pltpu.PrefetchScalarGridSpec(
            num_scalar_prefetch=0,
            grid=(b, nq, nno),
            in_specs=[
                pl.BlockSpec((1, tq, d_out), lambda bi, qi, ni: (bi, qi, 0)),
                pl.BlockSpec((d_out, tno), lambda bi, qi, ni: (0, ni)),
                pl.BlockSpec((1, tno), lambda bi, qi, ni: (0, ni)),
            ],
            out_specs=pl.BlockSpec((1, tq, tno),
                                   lambda bi, qi, ni: (bi, qi, ni)),
        ),
        compiler_params=pltpu.CompilerParams(
            dimension_semantics=("parallel", "parallel", "parallel"),
            vmem_limit_bytes=vmem_limit),
    )(ctx, wo_p, bo_p)

    return out_p if d_out_pad == d_out else out_p[..., :d_out]


def _reference(x, wq, wk, wv, wo, bo, num_heads):
    """Plain-JAX reference mirroring the PyTorch forward (dropout=0, eval)."""
    b, T, d_in = x.shape
    d_out = wq.shape[1]
    hd = d_out // num_heads
    q = (x @ wq).reshape(b, T, num_heads, hd).transpose(0, 2, 1, 3)
    k = (x @ wk).reshape(b, T, num_heads, hd).transpose(0, 2, 1, 3)
    v = (x @ wv).reshape(b, T, num_heads, hd).transpose(0, 2, 1, 3)
    s = jnp.einsum("bhtd,bhsd->bhts", q, k)
    mask = jnp.triu(jnp.ones((T, T), dtype=bool), k=1)
    s = jnp.where(mask[None, None], -jnp.inf, s)
    w = jax.nn.softmax(s / math.sqrt(hd), axis=-1)
    ctx = jnp.einsum("bhts,bhsd->bhtd", w, v).transpose(0, 2, 1, 3)
    return ctx.reshape(b, T, d_out) @ wo + bo


if __name__ == "__main__":
    # Small shapes consistent with the module.
    batch, seq, d_in, d_out, num_heads = 2, 8, 32, 32, 4
    dropout = 0.0  # eval-mode semantics: dropout is a no-op

    key = jax.random.PRNGKey(0)
    kx, kq, kk, kv, ko, kb = jax.random.split(key, 6)
    x = jax.random.normal(kx, (batch, seq, d_in), dtype=jnp.float32)
    lim_in = 1.0 / math.sqrt(d_in)
    lim_out = 1.0 / math.sqrt(d_out)
    wq = jax.random.uniform(kq, (d_in, d_out), minval=-lim_in, maxval=lim_in)
    wk = jax.random.uniform(kk, (d_in, d_out), minval=-lim_in, maxval=lim_in)
    wv = jax.random.uniform(kv, (d_in, d_out), minval=-lim_in, maxval=lim_in)
    wo = jax.random.uniform(ko, (d_out, d_out), minval=-lim_out, maxval=lim_out)
    bo = jax.random.uniform(kb, (d_out,), minval=-lim_out, maxval=lim_out)

    mha = jax.jit(functools.partial(multi_head_attention, num_heads=num_heads))
    out = jax.block_until_ready(mha(x, wq, wk, wv, wo, bo))

    ref = _reference(x, wq, wk, wv, wo, bo, num_heads)
    assert out.shape == (batch, seq, d_out)
    # Tolerance accounts for bf16 MXU operands and the EUP approximate
    # reciprocal in the softmax normalization.
    assert jnp.allclose(out, ref, atol=2e-2, rtol=2e-2), "mismatch vs reference"

    print("KERNEL_OK")
</pallas_src>

<mosaic_0001>
module attributes {stable_mosaic.version = 11 : i64} {
  func.func @_qkv_proj_kernel(%arg0: i32, %arg1: i32, %arg2: i32, %arg3: memref<1x8x32xbf16, #tpu.memory_space<vmem>>, %arg4: memref<32x96xbf16, #tpu.memory_space<vmem>>, %arg5: memref<1x8x96xbf16, #tpu.memory_space<vmem>>) attributes {dimension_semantics = [#tpu.dimension_semantics<parallel>, #tpu.dimension_semantics<parallel>, #tpu.dimension_semantics<parallel>], iteration_bounds = array<i64: 2, 1, 1>, scalar_prefetch = 0 : i64, scratch_operands = 0 : i64, tpu.core_type = #tpu.core_type<tc>, window_params = [{transform_indices = @transform_0, window_bounds = array<i64: 1, 8, 32>}, {transform_indices = @transform_1, window_bounds = array<i64: 32, 96>}, {transform_indices = @transform_2, window_bounds = array<i64: 1, 8, 96>}]} {
    %c0 = arith.constant 0 : index
    %c0_0 = arith.constant 0 : index
    %c0_1 = arith.constant 0 : index
    %0 = vector.load %arg3[%c0, %c0_0, %c0_1] : memref<1x8x32xbf16, #tpu.memory_space<vmem>>, vector<1x8x32xbf16>
    %1 = vector.shape_cast %0 : vector<1x8x32xbf16> to vector<8x32xbf16>
    %c0_2 = arith.constant 0 : index
    %c0_3 = arith.constant 0 : index
    %2 = vector.load %arg4[%c0_2, %c0_3] : memref<32x96xbf16, #tpu.memory_space<vmem>>, vector<32x96xbf16>
    %cst = arith.constant dense<0.000000e+00> : vector<8x96xf32>
    %3 = tpu.matmul %1, %2, %cst {dimension_numbers = #tpu.dot_dimension_numbers<[1], [0], [0], [1], [0, 0, 1, 1], [], []>} : vector<8x32xbf16>, vector<32x96xbf16>, vector<8x96xf32> -> vector<8x96xf32>
    %4 = arith.truncf %3 : vector<8x96xf32> to vector<8x96xbf16>
    %c0_4 = arith.constant 0 : index
    %c0_5 = arith.constant 0 : index
    %c0_6 = arith.constant 0 : index
    %5 = vector.load %arg5[%c0_4, %c0_5, %c0_6] : memref<1x8x96xbf16, #tpu.memory_space<vmem>>, vector<1x8x96xbf16>
    %6 = vector.shape_cast %5 : vector<1x8x96xbf16> to vector<8x96xbf16>
    %7 = vector.shape_cast %4 : vector<8x96xbf16> to vector<1x8x96xbf16>
    tpu.vector_store %arg5[%c0_4, %c0_5, %c0_6], %7 {strides = array<i32>} : memref<1x8x96xbf16, #tpu.memory_space<vmem>>, vector<1x8x96xbf16>,
    return
  }
  func.func @transform_0(%arg0: i32, %arg1: i32, %arg2: i32) -> (i32, i32, i32) {
    %c0_i32 = arith.constant 0 : i32
    %c0_i32_0 = arith.constant 0 : i32
    return %arg0, %arg1, %c0_i32 : i32, i32, i32
  }
  func.func @transform_1(%arg0: i32, %arg1: i32, %arg2: i32) -> (i32, i32) {
    %c0_i32 = arith.constant 0 : i32
    %c0_i32_0 = arith.constant 0 : i32
    return %c0_i32, %arg2 : i32, i32
  }
  func.func @transform_2(%arg0: i32, %arg1: i32, %arg2: i32) -> (i32, i32, i32) {
    %c0_i32 = arith.constant 0 : i32
    return %arg0, %arg1, %arg2 : i32, i32, i32
  }
}

module attributes {stable_mosaic.version = 11 : i64} {
  func.func @_flash_attn_kernel(%arg0: i32, %arg1: i32, %arg2: i32, %arg3: i32, %arg4: memref<1x1x8x8xbf16, #tpu.memory_space<vmem>>, %arg5: memref<1x1x8x8xbf16, #tpu.memory_space<vmem>>, %arg6: memref<1x1x8x8xbf16, #tpu.memory_space<vmem>>, %arg7: memref<1x1x8x8xbf16, #tpu.memory_space<vmem>>, %arg8: memref<8x1xf32, #tpu.memory_space<vmem>>, %arg9: memref<8x1xf32, #tpu.memory_space<vmem>>, %arg10: memref<8x8xf32, #tpu.memory_space<vmem>>) attributes {dimension_semantics = [#tpu.dimension_semantics<parallel>, #tpu.dimension_semantics<parallel>, #tpu.dimension_semantics<parallel>, #tpu.dimension_semantics<arbitrary>], iteration_bounds = array<i64: 2, 4, 1, 1>, scalar_prefetch = 0 : i64, scratch_operands = 3 : i64, tpu.core_type = #tpu.core_type<tc>, window_params = [{transform_indices = @transform_0, window_bounds = array<i64: 1, 1, 8, 8>}, {transform_indices = @transform_1, window_bounds = array<i64: 1, 1, 8, 8>}, {transform_indices = @transform_2, window_bounds = array<i64: 1, 1, 8, 8>}, {transform_indices = @transform_3, window_bounds = array<i64: 1, 1, 8, 8>}]} {
    %c8_i32 = arith.constant 8 : i32
    %0 = arith.muli %arg2, %c8_i32 : i32
    %c8_i32_0 = arith.constant 8 : i32
    %1 = arith.muli %arg3, %c8_i32_0 : i32
    %c0_i32 = arith.constant 0 : i32
    %2 = arith.cmpi eq, %arg3, %c0_i32 : i32
    %3 = arith.extui %2 : i1 to i32
    %c0_i32_1 = arith.constant 0 : i32
    %4 = arith.cmpi ne, %3, %c0_i32_1 : i32
    scf.if %4 {
      %cst = arith.constant 0xFF800000 : f32
      %12 = vector.broadcast %cst : f32 to vector<8x1xf32>
      %c0 = arith.constant 0 : index
      %c0_6 = arith.constant 0 : index
      %13 = vector.load %arg8[%c0, %c0_6] : memref<8x1xf32, #tpu.memory_space<vmem>>, vector<8x1xf32>
      tpu.vector_store %arg8[%c0, %c0_6], %12 {strides = array<i32>} : memref<8x1xf32, #tpu.memory_space<vmem>>, vector<8x1xf32>,
      %cst_7 = arith.constant 0.000000e+00 : f32
      %14 = vector.broadcast %cst_7 : f32 to vector<8x1xf32>
      %c0_8 = arith.constant 0 : index
      %c0_9 = arith.constant 0 : index
      %15 = vector.load %arg9[%c0_8, %c0_9] : memref<8x1xf32, #tpu.memory_space<vmem>>, vector<8x1xf32>
      tpu.vector_store %arg9[%c0_8, %c0_9], %14 {strides = array<i32>} : memref<8x1xf32, #tpu.memory_space<vmem>>, vector<8x1xf32>,
      %cst_10 = arith.constant 0.000000e+00 : f32
      %16 = vector.broadcast %cst_10 : f32 to vector<8x8xf32>
      %c0_11 = arith.constant 0 : index
      %c0_12 = arith.constant 0 : index
      %17 = vector.load %arg10[%c0_11, %c0_12] : memref<8x8xf32, #tpu.memory_space<vmem>>, vector<8x8xf32>
      tpu.vector_store %arg10[%c0_11, %c0_12], %16 {strides = array<i32>} : memref<8x8xf32, #tpu.memory_space<vmem>>, vector<8x8xf32>,
    } else {
    }
    %c8_i32_2 = arith.constant 8 : i32
    %5 = arith.addi %0, %c8_i32_2 : i32
    %6 = arith.cmpi slt, %1, %5 : i32
    %7 = arith.extui %6 : i1 to i32
    %c0_i32_3 = arith.constant 0 : i32
    %8 = arith.cmpi ne, %7, %c0_i32_3 : i32
    scf.if %8 {
      %c0 = arith.constant 0 : index
      %c0_6 = arith.constant 0 : index
      %c0_7 = arith.constant 0 : index
      %c0_8 = arith.constant 0 : index
      %12 = vector.load %arg4[%c0, %c0_6, %c0_7, %c0_8] : memref<1x1x8x8xbf16, #tpu.memory_space<vmem>>, vector<1x1x8x8xbf16>
      %13 = vector.shape_cast %12 : vector<1x1x8x8xbf16> to vector<8x8xbf16>
      %c0_9 = arith.constant 0 : index
      %c0_10 = arith.constant 0 : index
      %c0_11 = arith.constant 0 : index
      %c0_12 = arith.constant 0 : index
      %14 = vector.load %arg5[%c0_9, %c0_10, %c0_11, %c0_12] : memref<1x1x8x8xbf16, #tpu.memory_space<vmem>>, vector<1x1x8x8xbf16>
      %15 = vector.shape_cast %14 : vector<1x1x8x8xbf16> to vector<8x8xbf16>
      %c0_13 = arith.constant 0 : index
      %c0_14 = arith.constant 0 : index
      %c0_15 = arith.constant 0 : index
      %c0_16 = arith.constant 0 : index
      %16 = vector.load %arg6[%c0_13, %c0_14, %c0_15, %c0_16] : memref<1x1x8x8xbf16, #tpu.memory_space<vmem>>, vector<1x1x8x8xbf16>
      %17 = vector.shape_cast %16 : vector<1x1x8x8xbf16> to vector<8x8xbf16>
      %cst = arith.constant dense<0.000000e+00> : vector<8x8xf32>
      %18 = tpu.matmul %13, %15, %cst {dimension_numbers = #tpu.dot_dimension_numbers<[1], [1], [0], [0], [0, 0, 1, 0], [], []>} : vector<8x8xbf16>, vector<8x8xbf16>, vector<8x8xf32> -> vector<8x8xf32>
      %19 = tpu.iota {dimensions = array<i32: 0>} : vector<8x8xi32>
      %20 = vector.broadcast %0 : i32 to vector<8x8xi32>
      %21 = arith.addi %20, %19 : vector<8x8xi32>
      %22 = tpu.iota {dimensions = array<i32: 1>} : vector<8x8xi32>
      %23 = vector.broadcast %1 : i32 to vector<8x8xi32>
      %24 = arith.addi %23, %22 : vector<8x8xi32>
      %25 = arith.cmpi sgt, %24, %21 : vector<8x8xi32>
      %cst_17 = arith.constant -1.000000e+30 : f32
      %26 = vector.broadcast %cst_17 : f32 to vector<8x8xf32>
      %27 = arith.select %25, %26, %18 : vector<8x8xi1>, vector<8x8xf32>
      %c0_18 = arith.constant 0 : index
      %c0_19 = arith.constant 0 : index
      %28 = vector.load %arg8[%c0_18, %c0_19] : memref<8x1xf32, #tpu.memory_space<vmem>>, vector<8x1xf32>
      %cst_20 = arith.constant dense<0xFF800000> : vector<8xf32>
      %29 = vector.multi_reduction <maximumf>, %27, %cst_20 [1] : vector<8x8xf32> to vector<8xf32>
      %30 = vector.shape_cast %29 : vector<8xf32> to vector<8x1xf32>
      %31 = arith.maximumf %28, %30 : vector<8x1xf32>
      %32 = arith.subf %28, %31 : vector<8x1xf32>
      %33 = math.exp %32 : vector<8x1xf32>
      %34 = vector.broadcast %31 : vector<8x1xf32> to vector<8x8xf32>
      %35 = arith.subf %27, %34 : vector<8x8xf32>
      %36 = math.exp %35 : vector<8x8xf32>
      %c0_21 = arith.constant 0 : index
      %c0_22 = arith.constant 0 : index
      %37 = vector.load %arg9[%c0_21, %c0_22] : memref<8x1xf32, #tpu.memory_space<vmem>>, vector<8x1xf32>
      %38 = arith.mulf %33, %37 : vector<8x1xf32>
      %cst_23 = arith.constant dense<0.000000e+00> : vector<8xf32>
      %39 = vector.multi_reduction <add>, %36, %cst_23 [1] : vector<8x8xf32> to vector<8xf32>
      %40 = vector.shape_cast %39 : vector<8xf32> to vector<8x1xf32>
      %41 = arith.addf %38, %40 : vector<8x1xf32>
      %c0_24 = arith.constant 0 : index
      %c0_25 = arith.constant 0 : index
      %42 = vector.load %arg9[%c0_24, %c0_25] : memref<8x1xf32, #tpu.memory_space<vmem>>, vector<8x1xf32>
      tpu.vector_store %arg9[%c0_24, %c0_25], %41 {strides = array<i32>} : memref<8x1xf32, #tpu.memory_space<vmem>>, vector<8x1xf32>,
      %c0_26 = arith.constant 0 : index
      %c0_27 = arith.constant 0 : index
      %43 = vector.load %arg10[%c0_26, %c0_27] : memref<8x8xf32, #tpu.memory_space<vmem>>, vector<8x8xf32>
      %44 = vector.broadcast %33 : vector<8x1xf32> to vector<8x8xf32>
      %45 = arith.mulf %44, %43 : vector<8x8xf32>
      %46 = arith.truncf %36 : vector<8x8xf32> to vector<8x8xbf16>
      %cst_28 = arith.constant dense<0.000000e+00> : vector<8x8xf32>
      %47 = tpu.matmul %46, %17, %cst_28 {dimension_numbers = #tpu.dot_dimension_numbers<[1], [0], [0], [1], [0, 0, 1, 1], [], []>} : vector<8x8xbf16>, vector<8x8xbf16>, vector<8x8xf32> -> vector<8x8xf32>
      %48 = arith.addf %45, %47 : vector<8x8xf32>
      %c0_29 = arith.constant 0 : index
      %c0_30 = arith.constant 0 : index
      %49 = vector.load %arg10[%c0_29, %c0_30] : memref<8x8xf32, #tpu.memory_space<vmem>>, vector<8x8xf32>
      tpu.vector_store %arg10[%c0_29, %c0_30], %48 {strides = array<i32>} : memref<8x8xf32, #tpu.memory_space<vmem>>, vector<8x8xf32>,
      %c0_31 = arith.constant 0 : index
      %c0_32 = arith.constant 0 : index
      %50 = vector.load %arg8[%c0_31, %c0_32] : memref<8x1xf32, #tpu.memory_space<vmem>>, vector<8x1xf32>
      tpu.vector_store %arg8[%c0_31, %c0_32], %31 {strides = array<i32>} : memref<8x1xf32, #tpu.memory_space<vmem>>, vector<8x1xf32>,
    } else {
    }
    %c0_i32_4 = arith.constant 0 : i32
    %9 = arith.cmpi eq, %arg3, %c0_i32_4 : i32
    %10 = arith.extui %9 : i1 to i32
    %c0_i32_5 = arith.constant 0 : i32
    %11 = arith.cmpi ne, %10, %c0_i32_5 : i32
    scf.if %11 {
      %c0 = arith.constant 0 : index
      %c0_6 = arith.constant 0 : index
      %12 = vector.load %arg9[%c0, %c0_6] : memref<8x1xf32, #tpu.memory_space<vmem>>, vector<8x1xf32>
      %13 = tpu.reciprocal %12 {approx = true} : vector<8x1xf32> -> vector<8x1xf32>
      %c0_7 = arith.constant 0 : index
      %c0_8 = arith.constant 0 : index
      %14 = vector.load %arg10[%c0_7, %c0_8] : memref<8x8xf32, #tpu.memory_space<vmem>>, vector<8x8xf32>
      %15 = vector.broadcast %13 : vector<8x1xf32> to vector<8x8xf32>
      %16 = arith.mulf %14, %15 : vector<8x8xf32>
      %17 = arith.truncf %16 : vector<8x8xf32> to vector<8x8xbf16>
      %c0_9 = arith.constant 0 : index
      %c0_10 = arith.constant 0 : index
      %c0_11 = arith.constant 0 : index
      %c0_12 = arith.constant 0 : index
      %18 = vector.load %arg7[%c0_9, %c0_10, %c0_11, %c0_12] : memref<1x1x8x8xbf16, #tpu.memory_space<vmem>>, vector<1x1x8x8xbf16>
      %19 = vector.shape_cast %18 : vector<1x1x8x8xbf16> to vector<8x8xbf16>
      %20 = vector.shape_cast %17 : vector<8x8xbf16> to vector<1x1x8x8xbf16>
      tpu.vector_store %arg7[%c0_9, %c0_10, %c0_11, %c0_12], %20 {strides = array<i32>} : memref<1x1x8x8xbf16, #tpu.memory_space<vmem>>, vector<1x1x8x8xbf16>,
    } else {
    }
    return
  }
  func.func @transform_0(%arg0: i32, %arg1: i32, %arg2: i32, %arg3: i32) -> (i32, i32, i32, i32) {
    %c0_i32 = arith.constant 0 : i32
    %c0_i32_0 = arith.constant 0 : i32
    return %arg0, %arg1, %arg2, %c0_i32 : i32, i32, i32, i32
  }
  func.func @transform_1(%arg0: i32, %arg1: i32, %arg2: i32, %arg3: i32) -> (i32, i32, i32, i32) {
    %c0_i32 = arith.constant 0 : i32
    %c0_i32_0 = arith.constant 0 : i32
    return %arg0, %arg1, %arg3, %c0_i32 : i32, i32, i32, i32
  }
  func.func @transform_2(%arg0: i32, %arg1: i32, %arg2: i32, %arg3: i32) -> (i32, i32, i32, i32) {
    %c0_i32 = arith.constant 0 : i32
    %c0_i32_0 = arith.constant 0 : i32
    return %arg0, %arg1, %arg3, %c0_i32 : i32, i32, i32, i32
  }
  func.func @transform_3(%arg0: i32, %arg1: i32, %arg2: i32, %arg3: i32) -> (i32, i32, i32, i32) {
    %c0_i32 = arith.constant 0 : i32
    %c0_i32_0 = arith.constant 0 : i32
    return %arg0, %arg1, %arg2, %c0_i32 : i32, i32, i32, i32
  }
}

module attributes {stable_mosaic.version = 11 : i64} {
  func.func @_out_proj_kernel(%arg0: i32, %arg1: i32, %arg2: i32, %arg3: memref<1x8x32xbf16, #tpu.memory_space<vmem>>, %arg4: memref<32x128xbf16, #tpu.memory_space<vmem>>, %arg5: memref<1x128xf32, #tpu.memory_space<vmem>>, %arg6: memref<1x8x128xf32, #tpu.memory_space<vmem>>) attributes {dimension_semantics = [#tpu.dimension_semantics<parallel>, #tpu.dimension_semantics<parallel>, #tpu.dimension_semantics<parallel>], iteration_bounds = array<i64: 2, 1, 1>, scalar_prefetch = 0 : i64, scratch_operands = 0 : i64, tpu.core_type = #tpu.core_type<tc>, window_params = [{transform_indices = @transform_0, window_bounds = array<i64: 1, 8, 32>}, {transform_indices = @transform_1, window_bounds = array<i64: 32, 128>}, {transform_indices = @transform_2, window_bounds = array<i64: 1, 128>}, {transform_indices = @transform_3, window_bounds = array<i64: 1, 8, 128>}]} {
    %c0 = arith.constant 0 : index
    %c0_0 = arith.constant 0 : index
    %c0_1 = arith.constant 0 : index
    %0 = vector.load %arg3[%c0, %c0_0, %c0_1] : memref<1x8x32xbf16, #tpu.memory_space<vmem>>, vector<1x8x32xbf16>
    %1 = vector.shape_cast %0 : vector<1x8x32xbf16> to vector<8x32xbf16>
    %c0_2 = arith.constant 0 : index
    %c0_3 = arith.constant 0 : index
    %2 = vector.load %arg4[%c0_2, %c0_3] : memref<32x128xbf16, #tpu.memory_space<vmem>>, vector<32x128xbf16>
    %cst = arith.constant dense<0.000000e+00> : vector<8x128xf32>
    %3 = tpu.matmul %1, %2, %cst {dimension_numbers = #tpu.dot_dimension_numbers<[1], [0], [0], [1], [0, 0, 1, 1], [], []>} : vector<8x32xbf16>, vector<32x128xbf16>, vector<8x128xf32> -> vector<8x128xf32>
    %c0_4 = arith.constant 0 : index
    %c0_5 = arith.constant 0 : index
    %4 = vector.load %arg5[%c0_4, %c0_5] : memref<1x128xf32, #tpu.memory_space<vmem>>, vector<1x128xf32>
    %5 = vector.broadcast %4 : vector<1x128xf32> to vector<8x128xf32>
    %6 = arith.addf %3, %5 : vector<8x128xf32>
    %c0_6 = arith.constant 0 : index
    %c0_7 = arith.constant 0 : index
    %c0_8 = arith.constant 0 : index
    %7 = vector.load %arg6[%c0_6, %c0_7, %c0_8] : memref<1x8x128xf32, #tpu.memory_space<vmem>>, vector<1x8x128xf32>
    %8 = vector.shape_cast %7 : vector<1x8x128xf32> to vector<8x128xf32>
    %9 = vector.shape_cast %6 : vector<8x128xf32> to vector<1x8x128xf32>
    tpu.vector_store %arg6[%c0_6, %c0_7, %c0_8], %9 {strides = array<i32>} : memref<1x8x128xf32, #tpu.memory_space<vmem>>, vector<1x8x128xf32>,
    return
  }
  func.func @transform_0(%arg0: i32, %arg1: i32, %arg2: i32) -> (i32, i32, i32) {
    %c0_i32 = arith.constant 0 : i32
    %c0_i32_0 = arith.constant 0 : i32
    return %arg0, %arg1, %c0_i32 : i32, i32, i32
  }
  func.func @transform_1(%arg0: i32, %arg1: i32, %arg2: i32) -> (i32, i32) {
    %c0_i32 = arith.constant 0 : i32
    %c0_i32_0 = arith.constant 0 : i32
    return %c0_i32, %arg2 : i32, i32
  }
  func.func @transform_2(%arg0: i32, %arg1: i32, %arg2: i32) -> (i32, i32) {
    %c0_i32 = arith.constant 0 : i32
    %c0_i32_0 = arith.constant 0 : i32
    return %c0_i32, %arg2 : i32, i32
  }
  func.func @transform_3(%arg0: i32, %arg1: i32, %arg2: i32) -> (i32, i32, i32) {
    %c0_i32 = arith.constant 0 : i32
    return %arg0, %arg1, %arg2 : i32, i32, i32
  }
}

</mosaic_0001>

<llo_original>
// kernel: multi_head_attention.3
$region0: #{multi_head_attention.3}
  #allocation0 [shape = 'u32[]', space=smem, size = 0x4, offset = 0x4, fixed_abs, tag = 'smem constant byte address 0x4 - core index']
  #allocation1 [shape = 'u32[144,128]{1,0:T(1,128)}', space=vmem, size = 0x12000, scoped, tag = 'internal scratch']
  %s0 = inlined_call_operand.hbm [shape: bf16[2,8,32], index: 0, kind: input, shape index: {}]
  %s1 = inlined_call_operand.hbm [shape: bf16[32,96], index: 1, kind: input, shape index: {}]
  %s2 = inlined_call_operand.hbm [shape: bf16[2,8,96], index: 2, kind: output, shape index: {}]
  %s3 = sld [smem:[#allocation0]]
  $region49: #{multi_head_attention.3} parent=0
    _
  %s5 = ssub.s32 1, %s3
  %s6 = scalar_select 0, %s5, %s3
  $region1: #{multi_head_attention.3} parent=0
    #allocation2 [shape = 'u8[4096]{0}', space=vmem, size = 0x1000, scoped, tag = 'input window, operand 0']
    #allocation3 [shape = 's32[2]{0}', space=sflag, size = 0x8, scoped, tag = 'scoped memory for multi_head_attention.3']
    #allocation4 [shape = 's32[2]{0}', space=sflag, size = 0x8, scoped, tag = 'scoped memory for multi_head_attention.3']
    #allocation5 [shape = 'u8[8192]{0}', space=vmem, size = 0x2000, scoped, tag = 'input window, operand 1, single buffered']
    #allocation6 [shape = 's32[1]{0}', space=sflag, size = 0x4, scoped, tag = 'scoped memory for multi_head_attention.3']
    #allocation7 [shape = 'u8[4096]{0}', space=vmem, size = 0x1000, scoped, tag = 'output window, operand 0']
    %7 = vsyncpa [#allocation3], 0
    %s8 = scalar_lea.sflag [#allocation3], 1
    %9 = vsyncpa %s8, 0
    %10 = vsyncpa [#allocation6], 0
    %11 = vsyncpa [#allocation4], 0
    %s12 = scalar_lea.sflag [#allocation4], 1
    %13 = vsyncpa %s12, 0
    loop: start=0, step=1, limit=4
    $region2: #{multi_head_attention.3} parent=1 // loop_pre_header
      _
    $region3: #{multi_head_attention.3} parent=1 // loop_header
      %s15 = sphi 0, %s19
      %p16 = scmp.ge.s32.totalorder %s15, 4
      %s22 = sphi 0, %s41
      %s23 = sphi 0, %s37
      %s24 = sphi 0, %s33
      %s25 = sphi 0, %s22
      %s26 = sphi 0, %s23
      %s27 = sphi 0, %s24
      %s28 = sphi 0, %s25
      %s29 = sphi 0, %s26
      %s30 = sphi 0, %s27
      %s46 = sphi 0, %s48
      %s49 = sphi 0, %s46
      %s50 = sphi 0, %s49
      %s66 = sphi 0, %s50
      %s72 = sphi 0, %s74
      %s75 = sphi 0, %s72
      %s76 = sphi 0, %s75
      %s92 = sphi 0, %s76
      %s102 = sphi 0, %s104
      %s105 = sphi 0, %s102
      %s106 = sphi 0, %s105
      %s122 = sphi 0, %s106
    $region4: #{multi_head_attention.3} parent=1 // loop_header_branch
      %18 = sbr.rel (%p16) target = $region8
    $region5: #{multi_head_attention.3} parent=1 // loop_body
      %s20 = ssub.s32 %s15, 1
      %s21 = ssub.s32 %s15, 2
      %s31 = sadd.s32 1, %s24
      %p32 = scmp.ge.s32.totalorder %s31, 1
      %s33 = scalar_select %p32, 0, %s31
      %s34 = sadd.s32 1, %s23
      %s35 = scalar_select %p32, %s34, %s23
      %p36 = scmp.ge.s32.totalorder %s35, 1
      %s37 = scalar_select %p36, 0, %s35
      %s38 = sadd.s32 1, %s22
      %s39 = scalar_select %p36, %s38, %s22
      %p40 = scmp.ge.s32.totalorder %s39, 2
      %s41 = scalar_select %p40, 0, %s39
      %s42 = ssub.s32 %s22, %s41
      %s43 = ssub.s32 %s23, %s37
      %s44 = sor.u32 %s42, %s43
      %p45 = scmp.eq.s32.totalorder %s44, 0
      %s47 = sadd.s32 %s46, 1
      %s48 = scalar_select %p45, %s46, %s47
      %p51 = pneg %p45
      %p52 = scmp.eq.s32.totalorder %s15, 1
      %p53 = por %p51, %p52
      %p54 = scmp.ne.s32.totalorder %s46, %s49
      %p55 = scmp.eq.s32.totalorder %s15, 0
      %p56 = por %p54, %p55
      %p57 = scmp.ne.s32.totalorder %s46, %s49
      %p58 = scmp.eq.s32.totalorder %s20, 1
      %p59 = por %p57, %p58
      %p60 = scmp.ne.s32.totalorder %s49, %s50
      %p61 = scmp.eq.s32.totalorder %s20, 0
      %p62 = por %p60, %p61
      %p63 = scmp.ne.s32.totalorder %s49, %s50
      %p64 = scmp.eq.s32.totalorder %s21, 1
      %p65 = por %p63, %p64
      %p67 = scmp.ne.s32.totalorder %s50, %s66
      %p68 = scmp.eq.s32.totalorder %s21, 0
      %p69 = por %p67, %p68
      %s70 = ssub.s32 %s24, %s33
      %p71 = scmp.eq.s32.totalorder %s70, 0
      %s73 = sadd.s32 %s72, 1
      %s74 = scalar_select %p71, %s72, %s73
      %p77 = pneg %p71
      %p78 = scmp.eq.s32.totalorder %s15, 1
      %p79 = por %p77, %p78
      %p80 = scmp.ne.s32.totalorder %s72, %s75
      %p81 = scmp.eq.s32.totalorder %s15, 0
      %p82 = por %p80, %p81
      %p83 = scmp.ne.s32.totalorder %s72, %s75
      %p84 = scmp.eq.s32.totalorder %s20, 1
      %p85 = por %p83, %p84
      %p86 = scmp.ne.s32.totalorder %s75, %s76
      %p87 = scmp.eq.s32.totalorder %s20, 0
      %p88 = por %p86, %p87
      %p89 = scmp.ne.s32.totalorder %s75, %s76
      %p90 = scmp.eq.s32.totalorder %s21, 1
      %p91 = por %p89, %p90
      %p93 = scmp.ne.s32.totalorder %s76, %s92
      %p94 = scmp.eq.s32.totalorder %s21, 0
      %p95 = por %p93, %p94
      %s96 = ssub.s32 %s22, %s41
      %s97 = ssub.s32 %s23, %s37
      %s98 = sor.u32 %s96, %s97
      %s99 = ssub.s32 %s24, %s33
      %s100 = sor.u32 %s98, %s99
      %p101 = scmp.eq.s32.totalorder %s100, 0
      %s103 = sadd.s32 %s102, 1
      %s104 = scalar_select %p101, %s102, %s103
      %p107 = pneg %p101
      %p108 = scmp.eq.s32.totalorder %s15, 1
      %p109 = por %p107, %p108
      %p110 = scmp.ne.s32.totalorder %s102, %s105
      %p111 = scmp.eq.s32.totalorder %s15, 0
      %p112 = por %p110, %p111
      %p113 = scmp.ne.s32.totalorder %s102, %s105
      %p114 = scmp.eq.s32.totalorder %s20, 1
      %p115 = por %p113, %p114
      %p116 = scmp.ne.s32.totalorder %s105, %s106
      %p117 = scmp.eq.s32.totalorder %s20, 0
      %p118 = por %p116, %p117
      %p119 = scmp.ne.s32.totalorder %s105, %s106
      %p120 = scmp.eq.s32.totalorder %s21, 1
      %p121 = por %p119, %p120
      %p123 = scmp.ne.s32.totalorder %s106, %s122
      %p124 = scmp.eq.s32.totalorder %s21, 0
      %p125 = por %p123, %p124
      %p126 = scmp.le.s32.totalorder 1, %s15
      %p127 = scmp.lt.s32.totalorder %s15, 3
      %p128 = pnand %p126, %p127
      %p129 = pneg %p128
      // Predicated region
      $region9: #{multi_head_attention.3} parent=5 // pred_check
        _
      $region10: #{multi_head_attention.3} parent=5 // pred_check_branch
        %131 = sbr.rel (%p128) target = $region12
      $region11: #{multi_head_attention.3} parent=5 // pred_region
        %s132 = ssub.s32 %s15, 1
        // Predicated region
        $region13: #{multi_head_attention.3} parent=11 // pred_check
          %p133 = pneg %p88
        $region14: #{multi_head_attention.3} parent=11 // pred_check_branch
          %135 = sbr.rel (%p133) target = $region16
        $region15: #{multi_head_attention.3} parent=11 // pred_region
          %s137 = ssub.s32 256, 256
          %138 = vsyncadd [#allocation6], %s137
          %s139 = smul.addr %s27, 64
          %s140 = scalar_lea.hbm %s1, %s139
          %s141 = sshll.u32 [#allocation5], 4
          %s142 = int_to_ptr.vmem [resolvable:$true] %s141
          %147 = dma.hbm_to_vmem [thread:$0]  %s140, 256, %s142, [#allocation6], 64, 64, 4
        $region16: #{multi_head_attention.3} parent=11 // pred_fallthru
          _
      $region12: #{multi_head_attention.3} parent=5 // pred_fallthru
        _
      %p148 = scmp.lt.s32.totalorder %s15, 2
      // Predicated region
      $region17: #{multi_head_attention.3} parent=5 // pred_check
        %p149 = pneg %p148
      $region18: #{multi_head_attention.3} parent=5 // pred_check_branch
        %151 = sbr.rel (%p149) target = $region20
      $region19: #{multi_head_attention.3} parent=5 // pred_region
        // Predicated region
        $region21: #{multi_head_attention.3} parent=19 // pred_check
          %p152 = pneg %p56
        $region22: #{multi_head_attention.3} parent=19 // pred_check_branch
          %154 = sbr.rel (%p152) target = $region24
        $region23: #{multi_head_attention.3} parent=19 // pred_region
          %s155 = sand.u32 %s46, 1
          %s156 = scalar_lea.sflag [#allocation3], %s155
          %s157 = sand.u32 %s46, 1
          %s158 = smul.addr %s157, 4
          %s159 = scalar_lea.vmem [#allocation2], %s158
          %s161 = ssub.s32 64, 64
          %162 = vsyncadd %s156, %s161
          %s163 = sadd.s32 %s23, %s22
          %s164 = smul.addr %s163, 64
          %s165 = scalar_lea.hbm %s0, %s164
          %s167 = sshll.u32 %s159, 4
          %s168 = int_to_ptr.vmem [resolvable:$true] %s167
          %170 = dma.hbm_to_vmem [thread:$0]  %s165, 64, %s168, %s156
        $region24: #{multi_head_attention.3} parent=19 // pred_fallthru
          _
      $region20: #{multi_head_attention.3} parent=5 // pred_fallthru
        _
      %p171 = scmp.le.s32.totalorder 1, %s15
      %p172 = scmp.lt.s32.totalorder %s15, 3
      %p173 = pnand %p171, %p172
      %p174 = pneg %p173
      // Predicated region
      $region25: #{multi_head_attention.3} parent=5 // pred_check
        _
      $region26: #{multi_head_attention.3} parent=5 // pred_check_branch
        %176 = sbr.rel (%p173) target = $region28
      $region27: #{multi_head_attention.3} parent=5 // pred_region
        %s177 = ssub.s32 %s15, 1
        %s178 = sand.u32 %s49, 1
        %s179 = scalar_lea.sflag [#allocation3], %s178
        %s180 = sand.u32 %s49, 1
        %s181 = smul.addr %s180, 4
        %s182 = scalar_lea.vmem [#allocation2], %s181
        // Predicated region
        $region29: #{multi_head_attention.3} parent=27 // pred_check
          %p183 = pneg %p62
        $region30: #{multi_head_attention.3} parent=27 // pred_check_branch
          %185 = sbr.rel (%p183) target = $region32
        $region31: #{multi_head_attention.3} parent=27 // pred_region
          %186 = dma.done %s179, 64
        $region32: #{multi_head_attention.3} parent=27 // pred_fallthru
          _
        // Predicated region
        $region33: #{multi_head_attention.3} parent=27 // pred_check
          %p187 = pneg %p88
        $region34: #{multi_head_attention.3} parent=27 // pred_check_branch
          %189 = sbr.rel (%p187) target = $region36
        $region35: #{multi_head_attention.3} parent=27 // pred_region
          %190 = dma.done [#allocation6], 256
        $region36: #{multi_head_attention.3} parent=27 // pred_fallthru
          _
        %s191 = sand.u32 %s49, 1
        %s192 = scalar_lea.sflag [#allocation3], %s191
        %s193 = sand.u32 %s49, 1
        %s194 = smul.addr %s193, 4
        %s195 = scalar_lea.vmem [#allocation2], %s194
        %p196 = pneg %p62
        %p197 = pneg %p59
        %p198 = pneg %p88
        %p199 = pneg %p85
        %p200 = pneg %p118
        %p201 = pneg %p115
        %s202 = sand.u32 %s105, 1
        %s203 = scalar_lea.sflag [#allocation4], %s202
        %s204 = sand.u32 %s105, 1
        %s205 = smul.addr %s204, 4
        %s206 = scalar_lea.vmem [#allocation7], %s205
        %v208 = vld [vmem:[%s182] sm:$0xf]
        %v209 = vld [vmem:[#allocation5] sm:$0xf]
        %v210 = vld [vmem:[#allocation5 + $0x4] sm:$0xf]
        %v211 = vld [vmem:[#allocation5 + $0x8] sm:$0xf]
        %v212 = vld [vmem:[#allocation5 + $0xc] sm:$0xf]
        %v217 = vunpack.c.l.b16 %v209
        %v218 = vunpack.c.l.b16 %v210
        %v219 = vunpack.c.l.b16 %v211
        %v220 = vunpack.c.l.b16 %v212
        %v221 = vpack.c.b16 %v218, %v217
        %v222 = vpack.c.b16 %v220, %v219
        %vm225 = vcmask 261120
        %v227 = vsel %vm225, %v208, 0
        %229 = vmatprep.subr.bf16.mxu0 0
        %230 = vmatpush1.bf16.msra.mxu0 %v221
        %231 = vmatprep.subr.bf16.mxu0 0
        %232 = vmatpush1.bf16.msra.mxu0 %v222
        %233 = vmatprep.subr.bf16.mxu0 0
        %234 = vmatpush1.bf16.msra.mxu0 0
        %235 = vmatprep.subr.bf16.mxu0 0
        %236 = vmatpush1.bf16.msra.mxu0 0
        %237 = vmatprep.subr.bf16.mxu0 0
        %238 = vmatpush1.bf16.msra.mxu0 0
        %239 = vmatprep.subr.bf16.mxu0 0
        %240 = vmatpush1.bf16.msra.mxu0 0
        %241 = vmatprep.subr.bf16.mxu0 0
        %242 = vmatpush1.bf16.msra.mxu0 0
        %243 = vmatprep.subr.bf16.mxu0 0
        %244 = vmatpush1.bf16.msra.mxu0 0
        %245 = vmatprep.subr.bf16.mxu0 0
        %246 = vmatpush1.bf16.msra.mxu0 0
        %247 = vmatprep.subr.bf16.mxu0 0
        %248 = vmatpush1.bf16.msra.mxu0 0
        %249 = vmatprep.subr.bf16.mxu0 0
        %250 = vmatpush1.bf16.msra.mxu0 0
        %251 = vmatprep.subr.bf16.mxu0 0
        %252 = vmatpush1.bf16.msra.mxu0 0
        %253 = vmatprep.subr.bf16.mxu0 0
        %254 = vmatpush1.bf16.msra.mxu0 0
        %255 = vmatprep.subr.bf16.mxu0 0
        %256 = vmatpush1.bf16.msra.mxu0 0
        %257 = vmatprep.subr.bf16.mxu0 0
        %258 = vmatpush1.bf16.msra.mxu0 0
        %259 = vmatprep.subr.bf16.mxu0 0
        %260 = vmatpush1.bf16.msra.mxu0 0
        %261 = vmatprep.mubr.bf16.mxu0 0
        %262 = vmatmul.mubr.bf16.gmra.mrb[0].mxu0 %v227
        %v263 = vpop.f32.mrb[0].mxu0
        %v264 = vadd.f32 0.0, %v263
        %v265 = vpop.f32.mrb[0].mxu0
        %v266 = vpop.f32.mrb[0].mxu0
        %v267 = vpop.f32.mrb[0].mxu0
        %268 = vdwg.mxu0
        %v269 = vpack.c.bf16 %v264, %v264
        %vm270 = vcmask 781312
        %271 = vst.msk [vmem:[%s206] sm:$0xf] %vm270, %v269
        %s272 = sand.u32 %s105, 1
        %s273 = scalar_lea.sflag [#allocation4], %s272
        %s274 = sand.u32 %s105, 1
        %s275 = smul.addr %s274, 4
        %s276 = scalar_lea.vmem [#allocation7], %s275
        // Predicated region
        $region37: #{multi_head_attention.3} parent=27 // pred_check
          %p277 = pneg %p115
        $region38: #{multi_head_attention.3} parent=27 // pred_check_branch
          %279 = sbr.rel (%p277) target = $region40
        $region39: #{multi_head_attention.3} parent=27 // pred_region
          %s281 = ssub.s32 64, 64
          %282 = vsyncadd %s273, %s281
          %s283 = sadd.s32 %s27, %s26
          %s284 = sadd.s32 %s283, %s25
          %s285 = smul.addr %s284, 64
          %s286 = scalar_lea.hbm %s2, %s285
          %s288 = sshll.u32 %s276, 4
          %s289 = int_to_ptr.vmem [resolvable:$true] %s288
          %291 = dma.vmem_to_hbm [thread:$0]  %s289, 64, %s286, %s273
        $region40: #{multi_head_attention.3} parent=27 // pred_fallthru
          _
      $region28: #{multi_head_attention.3} parent=5 // pred_fallthru
        _
      %p292 = scmp.le.s32.totalorder 2, %s15
      // Predicated region
      $region41: #{multi_head_attention.3} parent=5 // pred_check
        %p293 = pneg %p292
      $region42: #{multi_head_attention.3} parent=5 // pred_check_branch
        %295 = sbr.rel (%p293) target = $region44
      $region43: #{multi_head_attention.3} parent=5 // pred_region
        %s296 = ssub.s32 %s15, 2
        // Predicated region
        $region45: #{multi_head_attention.3} parent=43 // pred_check
          %p297 = pneg %p121
        $region46: #{multi_head_attention.3} parent=43 // pred_check_branch
          %299 = sbr.rel (%p297) target = $region48
        $region47: #{multi_head_attention.3} parent=43 // pred_region
          %s300 = sand.u32 %s106, 1
          %s301 = scalar_lea.sflag [#allocation4], %s300
          %s302 = sand.u32 %s106, 1
          %s303 = smul.addr %s302, 4
          %s304 = scalar_lea.vmem [#allocation7], %s303
          %305 = dma.done %s301, 64
        $region48: #{multi_head_attention.3} parent=43 // pred_fallthru
          _
      $region44: #{multi_head_attention.3} parent=5 // pred_fallthru
        _
    $region6: #{multi_head_attention.3} parent=1 // loop_footer
      %s19 = sadd.s32 1, %s15
    $region7: #{multi_head_attention.3} parent=1 // loop_footer_branch
      %14 = sbr.rel target = $region3
    $region8: #{multi_head_attention.3} parent=1 // loop_exit
      _
    %306 = vsyncpa [#allocation3], 1
    %s307 = scalar_lea.sflag [#allocation3], 1
    %308 = vsyncpa %s307, 1
    %309 = vsyncpa [#allocation6], 1
    %310 = vsyncpa [#allocation4], 1
    %s311 = scalar_lea.sflag [#allocation4], 1
    %312 = vsyncpa %s311, 1

// kernel: multi_head_attention.4
$region0: #{multi_head_attention.4}
  #allocation0 [shape = 'u32[]', space=smem, size = 0x4, offset = 0x4, fixed_abs, tag = 'smem constant byte address 0x4 - core index']
  #allocation1 [shape = 'u32[144,128]{1,0:T(1,128)}', space=vmem, size = 0x12000, scoped, tag = 'internal scratch']
  #allocation2 [shape = 'f32[8,1]{1,0:T(8,128)}', space=vmem, size = 0x1000, scoped, tag = 'scratch operand']
  #allocation3 [shape = 'f32[8,1]{1,0:T(8,128)}', space=vmem, size = 0x1000, scoped, tag = 'scratch operand']
  #allocation4 [shape = 'f32[8,8]{1,0:T(8,128)}', space=vmem, size = 0x1000, scoped, tag = 'scratch operand']
  %s0 = inlined_call_operand.hbm [shape: bf16[2,4,8,8], index: 0, kind: input, shape index: {}]
  %s1 = inlined_call_operand.hbm [shape: bf16[2,4,8,8], index: 1, kind: input, shape index: {}]
  %s2 = inlined_call_operand.hbm [shape: bf16[2,4,8,8], index: 2, kind: input, shape index: {}]
  %s3 = inlined_call_operand.hbm [shape: bf16[2,4,8,8], index: 3, kind: output, shape index: {}]
  %s4 = sld [smem:[#allocation0]]
  $region69: #{multi_head_attention.4} parent=0
    _
  %s6 = ssub.s32 1, %s4
  %s7 = scalar_select 0, %s6, %s4
  $region1: #{multi_head_attention.4} parent=0
    #allocation5 [shape = 'u8[4096]{0}', space=vmem, size = 0x1000, scoped, tag = 'input window, operand 0']
    #allocation6 [shape = 's32[2]{0}', space=sflag, size = 0x8, scoped, tag = 'scoped memory for multi_head_attention.4']
    #allocation7 [shape = 's32[2]{0}', space=sflag, size = 0x8, scoped, tag = 'scoped memory for multi_head_attention.4']
    #allocation8 [shape = 'u8[4096]{0}', space=vmem, size = 0x1000, scoped, tag = 'input window, operand 1']
    #allocation9 [shape = 's32[2]{0}', space=sflag, size = 0x8, scoped, tag = 'scoped memory for multi_head_attention.4']
    #allocation10 [shape = 'u8[4096]{0}', space=vmem, size = 0x1000, scoped, tag = 'input window, operand 2']
    #allocation11 [shape = 'u8[4096]{0}', space=vmem, size = 0x1000, scoped, tag = 'output window, operand 0']
    %8 = vsyncpa [#allocation6], 0
    %s9 = scalar_lea.sflag [#allocation6], 1
    %10 = vsyncpa %s9, 0
    %11 = vsyncpa [#allocation9], 0
    %s12 = scalar_lea.sflag [#allocation9], 1
    %13 = vsyncpa %s12, 0
    %14 = vsyncpa [#allocation7], 0
    %s15 = scalar_lea.sflag [#allocation7], 1
    %16 = vsyncpa %s15, 0
    loop: start=0, step=1, limit=10
    $region2: #{multi_head_attention.4} parent=1 // loop_pre_header
      _
    $region3: #{multi_head_attention.4} parent=1 // loop_header
      %s18 = sphi 0, %s22
      %p19 = scmp.ge.s32.totalorder %s18, 10
      %s25 = sphi 0, %s51
      %s26 = sphi 0, %s47
      %s27 = sphi 0, %s43
      %s28 = sphi 0, %s39
      %s29 = sphi 0, %s25
      %s30 = sphi 0, %s26
      %s31 = sphi 0, %s27
      %s32 = sphi 0, %s28
      %s33 = sphi 0, %s29
      %s34 = sphi 0, %s30
      %s35 = sphi 0, %s31
      %s36 = sphi 0, %s32
      %s58 = sphi 0, %s60
      %s61 = sphi 0, %s58
      %s62 = sphi 0, %s61
      %s78 = sphi 0, %s62
      %s88 = sphi 0, %s90
      %s91 = sphi 0, %s88
      %s92 = sphi 0, %s91
      %s108 = sphi 0, %s92
      %s118 = sphi 0, %s120
      %s121 = sphi 0, %s118
      %s122 = sphi 0, %s121
      %s138 = sphi 0, %s122
      %s148 = sphi 0, %s150
      %s151 = sphi 0, %s148
      %s152 = sphi 0, %s151
      %s168 = sphi 0, %s152
    $region4: #{multi_head_attention.4} parent=1 // loop_header_branch
      %21 = sbr.rel (%p19) target = $region8
    $region5: #{multi_head_attention.4} parent=1 // loop_body
      %s23 = ssub.s32 %s18, 1
      %s24 = ssub.s32 %s18, 2
      %s37 = sadd.s32 1, %s28
      %p38 = scmp.ge.s32.totalorder %s37, 1
      %s39 = scalar_select %p38, 0, %s37
      %s40 = sadd.s32 1, %s27
      %s41 = scalar_select %p38, %s40, %s27
      %p42 = scmp.ge.s32.totalorder %s41, 1
      %s43 = scalar_select %p42, 0, %s41
      %s44 = sadd.s32 1, %s26
      %s45 = scalar_select %p42, %s44, %s26
      %p46 = scmp.ge.s32.totalorder %s45, 4
      %s47 = scalar_select %p46, 0, %s45
      %s48 = sadd.s32 1, %s25
      %s49 = scalar_select %p46, %s48, %s25
      %p50 = scmp.ge.s32.totalorder %s49, 2
      %s51 = scalar_select %p50, 0, %s49
      %s52 = ssub.s32 %s25, %s51
      %s53 = ssub.s32 %s26, %s47
      %s54 = sor.u32 %s52, %s53
      %s55 = ssub.s32 %s27, %s43
      %s56 = sor.u32 %s54, %s55
      %p57 = scmp.eq.s32.totalorder %s56, 0
      %s59 = sadd.s32 %s58, 1
      %s60 = scalar_select %p57, %s58, %s59
      %p63 = pneg %p57
      %p64 = scmp.eq.s32.totalorder %s18, 7
      %p65 = por %p63, %p64
      %p66 = scmp.ne.s32.totalorder %s58, %s61
      %p67 = scmp.eq.s32.totalorder %s18, 0
      %p68 = por %p66, %p67
      %p69 = scmp.ne.s32.totalorder %s58, %s61
      %p70 = scmp.eq.s32.totalorder %s23, 7
      %p71 = por %p69, %p70
      %p72 = scmp.ne.s32.totalorder %s61, %s62
      %p73 = scmp.eq.s32.totalorder %s23, 0
      %p74 = por %p72, %p73
      %p75 = scmp.ne.s32.totalorder %s61, %s62
      %p76 = scmp.eq.s32.totalorder %s24, 7
      %p77 = por %p75, %p76
      %p79 = scmp.ne.s32.totalorder %s62, %s78
      %p80 = scmp.eq.s32.totalorder %s24, 0
      %p81 = por %p79, %p80
      %s82 = ssub.s32 %s25, %s51
      %s83 = ssub.s32 %s26, %s47
      %s84 = sor.u32 %s82, %s83
      %s85 = ssub.s32 %s28, %s39
      %s86 = sor.u32 %s84, %s85
      %p87 = scmp.eq.s32.totalorder %s86, 0
      %s89 = sadd.s32 %s88, 1
      %s90 = scalar_select %p87, %s88, %s89
      %p93 = pneg %p87
      %p94 = scmp.eq.s32.totalorder %s18, 7
      %p95 = por %p93, %p94
      %p96 = scmp.ne.s32.totalorder %s88, %s91
      %p97 = scmp.eq.s32.totalorder %s18, 0
      %p98 = por %p96, %p97
      %p99 = scmp.ne.s32.totalorder %s88, %s91
      %p100 = scmp.eq.s32.totalorder %s23, 7
      %p101 = por %p99, %p100
      %p102 = scmp.ne.s32.totalorder %s91, %s92
      %p103 = scmp.eq.s32.totalorder %s23, 0
      %p104 = por %p102, %p103
      %p105 = scmp.ne.s32.totalorder %s91, %s92
      %p106 = scmp.eq.s32.totalorder %s24, 7
      %p107 = por %p105, %p106
      %p109 = scmp.ne.s32.totalorder %s92, %s108
      %p110 = scmp.eq.s32.totalorder %s24, 0
      %p111 = por %p109, %p110
      %s112 = ssub.s32 %s25, %s51
      %s113 = ssub.s32 %s26, %s47
      %s114 = sor.u32 %s112, %s113
      %s115 = ssub.s32 %s28, %s39
      %s116 = sor.u32 %s114, %s115
      %p117 = scmp.eq.s32.totalorder %s116, 0
      %s119 = sadd.s32 %s118, 1
      %s120 = scalar_select %p117, %s118, %s119
      %p123 = pneg %p117
      %p124 = scmp.eq.s32.totalorder %s18, 7
      %p125 = por %p123, %p124
      %p126 = scmp.ne.s32.totalorder %s118, %s121
      %p127 = scmp.eq.s32.totalorder %s18, 0
      %p128 = por %p126, %p127
      %p129 = scmp.ne.s32.totalorder %s118, %s121
      %p130 = scmp.eq.s32.totalorder %s23, 7
      %p131 = por %p129, %p130
      %p132 = scmp.ne.s32.totalorder %s121, %s122
      %p133 = scmp.eq.s32.totalorder %s23, 0
      %p134 = por %p132, %p133
      %p135 = scmp.ne.s32.totalorder %s121, %s122
      %p136 = scmp.eq.s32.totalorder %s24, 7
      %p137 = por %p135, %p136
      %p139 = scmp.ne.s32.totalorder %s122, %s138
      %p140 = scmp.eq.s32.totalorder %s24, 0
      %p141 = por %p139, %p140
      %s142 = ssub.s32 %s25, %s51
      %s143 = ssub.s32 %s26, %s47
      %s144 = sor.u32 %s142, %s143
      %s145 = ssub.s32 %s27, %s43
      %s146 = sor.u32 %s144, %s145
      %p147 = scmp.eq.s32.totalorder %s146, 0
      %s149 = sadd.s32 %s148, 1
      %s150 = scalar_select %p147, %s148, %s149
      %p153 = pneg %p147
      %p154 = scmp.eq.s32.totalorder %s18, 7
      %p155 = por %p153, %p154
      %p156 = scmp.ne.s32.totalorder %s148, %s151
      %p157 = scmp.eq.s32.totalorder %s18, 0
      %p158 = por %p156, %p157
      %p159 = scmp.ne.s32.totalorder %s148, %s151
      %p160 = scmp.eq.s32.totalorder %s23, 7
      %p161 = por %p159, %p160
      %p162 = scmp.ne.s32.totalorder %s151, %s152
      %p163 = scmp.eq.s32.totalorder %s23, 0
      %p164 = por %p162, %p163
      %p165 = scmp.ne.s32.totalorder %s151, %s152
      %p166 = scmp.eq.s32.totalorder %s24, 7
      %p167 = por %p165, %p166
      %p169 = scmp.ne.s32.totalorder %s152, %s168
      %p170 = scmp.eq.s32.totalorder %s24, 0
      %p171 = por %p169, %p170
      %p172 = scmp.le.s32.totalorder 1, %s18
      %p173 = scmp.lt.s32.totalorder %s18, 9
      %p174 = pnand %p172, %p173
      %p175 = pneg %p174
      // Predicated region
      $region9: #{multi_head_attention.4} parent=5 // pred_check
        _
      $region10: #{multi_head_attention.4} parent=5 // pred_check_branch
        %177 = sbr.rel (%p174) target = $region12
      $region11: #{multi_head_attention.4} parent=5 // pred_region
        %s178 = ssub.s32 %s18, 1
      $region12: #{multi_head_attention.4} parent=5 // pred_fallthru
        _
      %p179 = scmp.lt.s32.totalorder %s18, 8
      // Predicated region
      $region13: #{multi_head_attention.4} parent=5 // pred_check
        %p180 = pneg %p179
      $region14: #{multi_head_attention.4} parent=5 // pred_check_branch
        %182 = sbr.rel (%p180) target = $region16
      $region15: #{multi_head_attention.4} parent=5 // pred_region
        // Predicated region
        $region17: #{multi_head_attention.4} parent=15 // pred_check
          %p183 = pneg %p68
        $region18: #{multi_head_attention.4} parent=15 // pred_check_branch
          %185 = sbr.rel (%p183) target = $region20
        $region19: #{multi_head_attention.4} parent=15 // pred_region
          %s186 = sand.u32 %s58, 1
          %s187 = scalar_lea.sflag [#allocation6], %s186
          %s188 = sand.u32 %s58, 1
          %s189 = smul.addr %s188, 4
          %s190 = scalar_lea.vmem [#allocation5], %s189
          %s192 = ssub.s32 64, 64
          %193 = vsyncadd %s187, %s192
          %s194 = sadd.s32 %s27, %s26
          %s195 = smul.addr %s25, 4
          %s196 = sadd.s32 %s194, %s195
          %s197 = smul.addr %s196, 64
          %s198 = scalar_lea.hbm %s0, %s197
          %s200 = sshll.u32 %s190, 4
          %s201 = int_to_ptr.vmem [resolvable:$true] %s200
          %203 = dma.hbm_to_vmem [thread:$0]  %s198, 64, %s201, %s187
        $region20: #{multi_head_attention.4} parent=15 // pred_fallthru
          _
        // Predicated region
        $region21: #{multi_head_attention.4} parent=15 // pred_check
          %p204 = pneg %p98
        $region22: #{multi_head_attention.4} parent=15 // pred_check_branch
          %206 = sbr.rel (%p204) target = $region24
        $region23: #{multi_head_attention.4} parent=15 // pred_region
          %s207 = sand.u32 %s18, 1
          %s208 = scalar_lea.sflag [#allocation9], %s207
          %s209 = sand.u32 %s88, 1
          %s210 = smul.addr %s209, 4
          %s211 = scalar_lea.vmem [#allocation8], %s210
          %s213 = ssub.s32 64, 64
          %214 = vsyncadd %s208, %s213
          %s215 = sadd.s32 %s28, %s26
          %s216 = smul.addr %s25, 4
          %s217 = sadd.s32 %s215, %s216
          %s218 = smul.addr %s217, 64
          %s219 = scalar_lea.hbm %s1, %s218
          %s221 = sshll.u32 %s211, 4
          %s222 = int_to_ptr.vmem [resolvable:$true] %s221
          %224 = dma.hbm_to_vmem [thread:$0]  %s219, 64, %s222, %s208
        $region24: #{multi_head_attention.4} parent=15 // pred_fallthru
          _
        // Predicated region
        $region25: #{multi_head_attention.4} parent=15 // pred_check
          %p225 = pneg %p128
        $region26: #{multi_head_attention.4} parent=15 // pred_check_branch
          %227 = sbr.rel (%p225) target = $region28
        $region27: #{multi_head_attention.4} parent=15 // pred_region
          %s228 = sand.u32 %s18, 1
          %s229 = scalar_lea.sflag [#allocation9], %s228
          %s230 = sand.u32 %s118, 1
          %s231 = smul.addr %s230, 4
          %s232 = scalar_lea.vmem [#allocation10], %s231
          %s234 = ssub.s32 64, 64
          %235 = vsyncadd %s229, %s234
          %s236 = sadd.s32 %s28, %s26
          %s237 = smul.addr %s25, 4
          %s238 = sadd.s32 %s236, %s237
          %s239 = smul.addr %s238, 64
          %s240 = scalar_lea.hbm %s2, %s239
          %s242 = sshll.u32 %s232, 4
          %s243 = int_to_ptr.vmem [resolvable:$true] %s242
          %245 = dma.hbm_to_vmem [thread:$0]  %s240, 64, %s243, %s229
        $region28: #{multi_head_attention.4} parent=15 // pred_fallthru
          _
      $region16: #{multi_head_attention.4} parent=5 // pred_fallthru
        _
      %p246 = scmp.le.s32.totalorder 1, %s18
      %p247 = scmp.lt.s32.totalorder %s18, 9
      %p248 = pnand %p246, %p247
      %p249 = pneg %p248
      // Predicated region
      $region29: #{multi_head_attention.4} parent=5 // pred_check
        _
      $region30: #{multi_head_attention.4} parent=5 // pred_check_branch
        %251 = sbr.rel (%p248) target = $region32
      $region31: #{multi_head_attention.4} parent=5 // pred_region
        %s252 = ssub.s32 %s18, 1
        %s253 = sand.u32 %s61, 1
        %s254 = scalar_lea.sflag [#allocation6], %s253
        %s255 = sand.u32 %s61, 1
        %s256 = smul.addr %s255, 4
        %s257 = scalar_lea.vmem [#allocation5], %s256
        // Predicated region
        $region33: #{multi_head_attention.4} parent=31 // pred_check
          %p258 = pneg %p74
        $region34: #{multi_head_attention.4} parent=31 // pred_check_branch
          %260 = sbr.rel (%p258) target = $region36
        $region35: #{multi_head_attention.4} parent=31 // pred_region
          %261 = dma.done %s254, 64
        $region36: #{multi_head_attention.4} parent=31 // pred_fallthru
          _
        %s262 = sand.u32 %s23, 1
        %s263 = scalar_lea.sflag [#allocation9], %s262
        %s264 = sand.u32 %s91, 1
        %s265 = smul.addr %s264, 4
        %s266 = scalar_lea.vmem [#allocation8], %s265
        // Predicated region
        $region37: #{multi_head_attention.4} parent=31 // pred_check
          %p267 = pneg %p104
        $region38: #{multi_head_attention.4} parent=31 // pred_check_branch
          %269 = sbr.rel (%p267) target = $region40
        $region39: #{multi_head_attention.4} parent=31 // pred_region
          %270 = dma.done %s263, 64
        $region40: #{multi_head_attention.4} parent=31 // pred_fallthru
          _
        %s271 = sand.u32 %s23, 1
        %s272 = scalar_lea.sflag [#allocation9], %s271
        %s273 = sand.u32 %s121, 1
        %s274 = smul.addr %s273, 4
        %s275 = scalar_lea.vmem [#allocation10], %s274
        // Predicated region
        $region41: #{multi_head_attention.4} parent=31 // pred_check
          %p276 = pneg %p134
        $region42: #{multi_head_attention.4} parent=31 // pred_check_branch
          %278 = sbr.rel (%p276) target = $region44
        $region43: #{multi_head_attention.4} parent=31 // pred_region
          %279 = dma.done %s272, 64
        $region44: #{multi_head_attention.4} parent=31 // pred_fallthru
          _
        %s280 = sand.u32 %s61, 1
        %s281 = scalar_lea.sflag [#allocation6], %s280
        %s282 = sand.u32 %s61, 1
        %s283 = smul.addr %s282, 4
        %s284 = scalar_lea.vmem [#allocation5], %s283
        %p285 = pneg %p74
        %p286 = pneg %p71
        %s287 = sand.u32 %s23, 1
        %s288 = scalar_lea.sflag [#allocation9], %s287
        %s289 = sand.u32 %s91, 1
        %s290 = smul.addr %s289, 4
        %s291 = scalar_lea.vmem [#allocation8], %s290
        %p292 = pneg %p104
        %p293 = pneg %p101
        %s294 = sand.u32 %s23, 1
        %s295 = scalar_lea.sflag [#allocation9], %s294
        %s296 = sand.u32 %s121, 1
        %s297 = smul.addr %s296, 4
        %s298 = scalar_lea.vmem [#allocation10], %s297
        %p299 = pneg %p134
        %p300 = pneg %p131
        %p301 = pneg %p164
        %p302 = pneg %p161
        %s303 = sand.u32 %s151, 1
        %s304 = scalar_lea.sflag [#allocation7], %s303
        %s305 = sand.u32 %s151, 1
        %s306 = smul.addr %s305, 4
        %s307 = scalar_lea.vmem [#allocation11], %s306
        %s309 = smul.u32 %s31, 8
        %s310 = smul.u32 %s32, 8
        %p311 = scmp.eq.s32.totalorder %s32, 0
        // Predicated region
        $region45: #{multi_head_attention.4} parent=31 // pred_check
          %p312 = pneg %p311
        $region46: #{multi_head_attention.4} parent=31 // pred_check_branch
          %314 = sbr.rel (%p312) target = $region48
        $region47: #{multi_head_attention.4} parent=31 // pred_region
          %vm315 = vcmask 7168
          %316 = vst.msk [vmem:[#allocation2] sm:$0xff] %vm315, -inf
          %317 = vst.msk [vmem:[#allocation3] sm:$0xff] %vm315, 0.0
          %vm318 = vcmask 64512
          %319 = vst.msk [vmem:[#allocation4] sm:$0xff] %vm318, 0.0
        $region48: #{multi_head_attention.4} parent=31 // pred_fallthru
          _
        %s320 = sadd.s32 %s309, 8
        %p321 = scmp.lt.s32.totalorder %s310, %s320
        // Predicated region
        $region49: #{multi_head_attention.4} parent=31 // pred_check
          %p322 = pneg %p321
        $region50: #{multi_head_attention.4} parent=31 // pred_check_branch
          %324 = sbr.rel (%p322) target = $region52
        $region51: #{multi_head_attention.4} parent=31 // pred_region
          %v325 = vld [vmem:[%s257] sm:$0xf]
          %v326 = vld [vmem:[%s266] sm:$0xf]
          %v327 = vld [vmem:[%s275] sm:$0xf]
          %vm328 = vcmask 64512
          %v330 = vsel %vm328, %v325, 0
          %v333 = vsel %vm328, %v326, 0
          %335 = vmatprep.subr.bf16.mxu0 0
          %336 = vmatpush1.bf16.xpose.msra.mxu0 %v333
          %337 = vmatprep.subr.bf16.mxu0 0
          %338 = vmatpush1.bf16.xpose.msra.mxu0 0
          %339 = vmatprep.subr.bf16.mxu0 0
          %340 = vmatpush1.bf16.xpose.msra.mxu0 0
          %341 = vmatprep.subr.bf16.mxu0 0
          %342 = vmatpush1.bf16.xpose.msra.mxu0 0
          %343 = vmatprep.subr.bf16.mxu0 0
          %344 = vmatpush1.bf16.xpose.msra.mxu0 0
          %345 = vmatprep.subr.bf16.mxu0 0
          %346 = vmatpush1.bf16.xpose.msra.mxu0 0
          %347 = vmatprep.subr.bf16.mxu0 0
          %348 = vmatpush1.bf16.xpose.msra.mxu0 0
          %349 = vmatprep.subr.bf16.mxu0 0
          %350 = vmatpush1.bf16.xpose.msra.mxu0 0
          %351 = vmatprep.subr.bf16.mxu0 0
          %352 = vmatpush1.bf16.xpose.msra.mxu0 0
          %353 = vmatprep.subr.bf16.mxu0 0
          %354 = vmatpush1.bf16.xpose.msra.mxu0 0
          %355 = vmatprep.subr.bf16.mxu0 0
          %356 = vmatpush1.bf16.xpose.msra.mxu0 0
          %357 = vmatprep.subr.bf16.mxu0 0
          %358 = vmatpush1.bf16.xpose.msra.mxu0 0
          %359 = vmatprep.subr.bf16.mxu0 0
          %360 = vmatpush1.bf16.xpose.msra.mxu0 0
          %361 = vmatprep.subr.bf16.mxu0 0
          %362 = vmatpush1.bf16.xpose.msra.mxu0 0
          %363 = vmatprep.subr.bf16.mxu0 0
          %364 = vmatpush1.bf16.xpose.msra.mxu0 0
          %365 = vmatprep.subr.bf16.mxu0 0
          %366 = vmatpush1.bf16.xpose.msra.mxu0 0
          %367 = vmatprep.mubr.bf16.mxu0 0
          %368 = vmatmul.mubr.bf16.gmra.mrb[0].mxu0 %v330
          %v369 = vpop.f32.mrb[0].mxu0
          %v370 = vadd.f32 0.0, %v369
          %v371 = vpop.f32.mrb[0].mxu0
          %v372 = vpop.f32.mrb[0].mxu0
          %v373 = vpop.f32.mrb[0].mxu0
          %374 = vdwg.mxu0
          %v375 = vlaneseq
          %v376 = vshrl.u32 %v375, 7
          %v377 = vstv %s309
          %v378 = vadd.s32 %v377, %v376
          %v379 = vlaneseq
          %v380 = vand.u32 %v379, 127
          %v381 = vstv %s310
          %v382 = vadd.s32 %v381, %v380
          %vm383 = vcmp.gt.s32.totalorder %v382, %v378
          %v384 = vsel %vm383, -1e+30, %v370
          %v385 = vld [vmem:[#allocation2] sm:$0xff]
          %v386 = vsel %vm328, %v384, -inf
          %387 = vmax.xlane.f32.xlu0 %v386
          %v388 = vpop.xlane.xlu0 %387
          %v389 = vmax.f32 %v385, %v388
          %v390 = vsub.f32 %v385, %v389
          %v391 = vmul.f32 %v390, 1.442695
          %v392 = vpow.pop %v391
          %394 = vset.pattern.permute.xlu0 0
          %395 = vperm.xlu0 %394, %v389
          %v396 = vpop.permute.xlu0 %395
          %v398 = vsub.f32 %v384, %v396
          %v399 = vmul.f32 %v398, 1.442695
          %v400 = vpow.pop %v399
          %v401 = vld [vmem:[#allocation3] sm:$0xff]
          %v402 = vmul.f32 %v392, %v401
          %v403 = vsel %vm328, %v400, 0.0
          %404 = vadd.xlane.f32.xlu0 %v403
          %v405 = vpop.xlane.xlu0 %404
          %v406 = vadd.f32 %v402, %v405
          %vm407 = vcmask 7168
          %408 = vst.msk [vmem:[#allocation3] sm:$0xff] %vm407, %v406
          %v409 = vld [vmem:[#allocation4] sm:$0xff]
          %411 = vset.pattern.permute.xlu0 0
          %412 = vperm.xlu0 %411, %v392
          %v413 = vpop.permute.xlu0 %412
          %v415 = vmul.f32 %v413, %v409
          %v416 = vpack.c.bf16 %v400, %v400
          %v418 = vsel %vm328, %v416, 0
          %vm420 = vcmask 1043456
          %v422 = vsel %vm420, %v327, 0
          %424 = vmatprep.subr.bf16.mxu0 0
          %425 = vmatpush1.bf16.msra.mxu0 %v422
          %426 = vmatprep.subr.bf16.mxu0 0
          %427 = vmatpush1.bf16.msra.mxu0 0
          %428 = vmatprep.subr.bf16.mxu0 0
          %429 = vmatpush1.bf16.msra.mxu0 0
          %430 = vmatprep.subr.bf16.mxu0 0
          %431 = vmatpush1.bf16.msra.mxu0 0
          %432 = vmatprep.subr.bf16.mxu0 0
          %433 = vmatpush1.bf16.msra.mxu0 0
          %434 = vmatprep.subr.bf16.mxu0 0
          %435 = vmatpush1.bf16.msra.mxu0 0
          %436 = vmatprep.subr.bf16.mxu0 0
          %437 = vmatpush1.bf16.msra.mxu0 0
          %438 = vmatprep.subr.bf16.mxu0 0
          %439 = vmatpush1.bf16.msra.mxu0 0
          %440 = vmatprep.subr.bf16.mxu0 0
          %441 = vmatpush1.bf16.msra.mxu0 0
          %442 = vmatprep.subr.bf16.mxu0 0
          %443 = vmatpush1.bf16.msra.mxu0 0
          %444 = vmatprep.subr.bf16.mxu0 0
          %445 = vmatpush1.bf16.msra.mxu0 0
          %446 = vmatprep.subr.bf16.mxu0 0
          %447 = vmatpush1.bf16.msra.mxu0 0
          %448 = vmatprep.subr.bf16.mxu0 0
          %449 = vmatpush1.bf16.msra.mxu0 0
          %450 = vmatprep.subr.bf16.mxu0 0
          %451 = vmatpush1.bf16.msra.mxu0 0
          %452 = vmatprep.subr.bf16.mxu0 0
          %453 = vmatpush1.bf16.msra.mxu0 0
          %454 = vmatprep.subr.bf16.mxu0 0
          %455 = vmatpush1.bf16.msra.mxu0 0
          %456 = vmatprep.mubr.bf16.mxu0 0
          %457 = vmatmul.mubr.bf16.gmra.mrb[0].mxu0 %v418
          %v458 = vpop.f32.mrb[0].mxu0
          %v459 = vadd.f32 0.0, %v458
          %v460 = vpop.f32.mrb[0].mxu0
          %v461 = vpop.f32.mrb[0].mxu0
          %v462 = vpop.f32.mrb[0].mxu0
          %463 = vdwg.mxu0
          %v464 = vadd.f32 %v415, %v459
          %465 = vst.msk [vmem:[#allocation4] sm:$0xff] %vm328, %v464
          %466 = vst.msk [vmem:[#allocation2] sm:$0xff] %vm407, %v389
        $region52: #{multi_head_attention.4} parent=31 // pred_fallthru
          _
        // Predicated region
        $region53: #{multi_head_attention.4} parent=31 // pred_check
          %p467 = pneg %p311
        $region54: #{multi_head_attention.4} parent=31 // pred_check_branch
          %469 = sbr.rel (%p467) target = $region56
        $region55: #{multi_head_attention.4} parent=31 // pred_region
          %v470 = vld [vmem:[#allocation3] sm:$0xff]
          %v471 = vrcp.pop %v470
          %v472 = vld [vmem:[#allocation4] sm:$0xff]
          %474 = vset.pattern.permute.xlu0 0
          %475 = vperm.xlu0 %474, %v471
          %v476 = vpop.permute.xlu0 %475
          %v478 = vmul.f32 %v472, %v476
          %v479 = vpack.c.bf16 %v478, %v478
          %vm480 = vcmask 60416
          %481 = vst.msk [vmem:[%s307] sm:$0xf] %vm480, %v479
        $region56: #{multi_head_attention.4} parent=31 // pred_fallthru
          _
        %s482 = sand.u32 %s151, 1
        %s483 = scalar_lea.sflag [#allocation7], %s482
        %s484 = sand.u32 %s151, 1
        %s485 = smul.addr %s484, 4
        %s486 = scalar_lea.vmem [#allocation11], %s485
        // Predicated region
        $region57: #{multi_head_attention.4} parent=31 // pred_check
          %p487 = pneg %p161
        $region58: #{multi_head_attention.4} parent=31 // pred_check_branch
          %489 = sbr.rel (%p487) target = $region60
        $region59: #{multi_head_attention.4} parent=31 // pred_region
          %s491 = ssub.s32 64, 64
          %492 = vsyncadd %s483, %s491
          %s493 = sadd.s32 %s31, %s30
          %s494 = smul.addr %s29, 4
          %s495 = sadd.s32 %s493, %s494
          %s496 = smul.addr %s495, 64
          %s497 = scalar_lea.hbm %s3, %s496
          %s499 = sshll.u32 %s486, 4
          %s500 = int_to_ptr.vmem [resolvable:$true] %s499
          %502 = dma.vmem_to_hbm [thread:$0]  %s500, 64, %s497, %s483
        $region60: #{multi_head_attention.4} parent=31 // pred_fallthru
          _
      $region32: #{multi_head_attention.4} parent=5 // pred_fallthru
        _
      %p503 = scmp.le.s32.totalorder 2, %s18
      // Predicated region
      $region61: #{multi_head_attention.4} parent=5 // pred_check
        %p504 = pneg %p503
      $region62: #{multi_head_attention.4} parent=5 // pred_check_branch
        %506 = sbr.rel (%p504) target = $region64
      $region63: #{multi_head_attention.4} parent=5 // pred_region
        %s507 = ssub.s32 %s18, 2
        // Predicated region
        $region65: #{multi_head_attention.4} parent=63 // pred_check
          %p508 = pneg %p167
        $region66: #{multi_head_attention.4} parent=63 // pred_check_branch
          %510 = sbr.rel (%p508) target = $region68
        $region67: #{multi_head_attention.4} parent=63 // pred_region
          %s511 = sand.u32 %s152, 1
          %s512 = scalar_lea.sflag [#allocation7], %s511
          %s513 = sand.u32 %s152, 1
          %s514 = smul.addr %s513, 4
          %s515 = scalar_lea.vmem [#allocation11], %s514
          %516 = dma.done %s512, 64
        $region68: #{multi_head_attention.4} parent=63 // pred_fallthru
          _
      $region64: #{multi_head_attention.4} parent=5 // pred_fallthru
        _
    $region6: #{multi_head_attention.4} parent=1 // loop_footer
      %s22 = sadd.s32 1, %s18
    $region7: #{multi_head_attention.4} parent=1 // loop_footer_branch
      %17 = sbr.rel target = $region3
    $region8: #{multi_head_attention.4} parent=1 // loop_exit
      _
    %517 = vsyncpa [#allocation6], 1
    %s518 = scalar_lea.sflag [#allocation6], 1
    %519 = vsyncpa %s518, 1
    %520 = vsyncpa [#allocation9], 1
    %s521 = scalar_lea.sflag [#allocation9], 1
    %522 = vsyncpa %s521, 1
    %523 = vsyncpa [#allocation7], 1
    %s524 = scalar_lea.sflag [#allocation7], 1
    %525 = vsyncpa %s524, 1

// kernel: multi_head_attention.5
$region0: #{multi_head_attention.5}
  #allocation0 [shape = 'u32[]', space=smem, size = 0x4, offset = 0x4, fixed_abs, tag = 'smem constant byte address 0x4 - core index']
  #allocation1 [shape = 'u32[144,128]{1,0:T(1,128)}', space=vmem, size = 0x12000, scoped, tag = 'internal scratch']
  %s0 = inlined_call_operand.hbm [shape: bf16[2,8,32], index: 0, kind: input, shape index: {}]
  %s1 = inlined_call_operand.hbm [shape: bf16[32,128], index: 1, kind: input, shape index: {}]
  %s2 = inlined_call_operand.hbm [shape: f32[1,128], index: 2, kind: input, shape index: {}]
  %s3 = inlined_call_operand.hbm [shape: f32[2,8,128], index: 3, kind: output, shape index: {}]
  %s4 = sld [smem:[#allocation0]]
  $region57: #{multi_head_attention.5} parent=0
    _
  %s6 = ssub.s32 1, %s4
  %s7 = scalar_select 0, %s6, %s4
  $region1: #{multi_head_attention.5} parent=0
    #allocation2 [shape = 'u8[4096]{0}', space=vmem, size = 0x1000, scoped, tag = 'input window, operand 0']
    #allocation3 [shape = 's32[2]{0}', space=sflag, size = 0x8, scoped, tag = 'scoped memory for multi_head_attention.5']
    #allocation4 [shape = 's32[2]{0}', space=sflag, size = 0x8, scoped, tag = 'scoped memory for multi_head_attention.5']
    #allocation5 [shape = 'u8[8192]{0}', space=vmem, size = 0x2000, scoped, tag = 'input window, operand 1, single buffered']
    #allocation6 [shape = 's32[1]{0}', space=sflag, size = 0x4, scoped, tag = 'scoped memory for multi_head_attention.5']
    #allocation7 [shape = 'u8[512]{0}', space=vmem, size = 0x400, scoped, tag = 'input window, operand 2, single buffered']
    #allocation8 [shape = 'u8[8192]{0}', space=vmem, size = 0x2000, scoped, tag = 'output window, operand 0']
    %8 = vsyncpa [#allocation3], 0
    %s9 = scalar_lea.sflag [#allocation3], 1
    %10 = vsyncpa %s9, 0
    %11 = vsyncpa [#allocation6], 0
    %12 = vsyncpa [#allocation4], 0
    %s13 = scalar_lea.sflag [#allocation4], 1
    %14 = vsyncpa %s13, 0
    loop: start=0, step=1, limit=4
    $region2: #{multi_head_attention.5} parent=1 // loop_pre_header
      _
    $region3: #{multi_head_attention.5} parent=1 // loop_header
      %s16 = sphi 0, %s20
      %p17 = scmp.ge.s32.totalorder %s16, 4
      %s23 = sphi 0, %s42
      %s24 = sphi 0, %s38
      %s25 = sphi 0, %s34
      %s26 = sphi 0, %s23
      %s27 = sphi 0, %s24
      %s28 = sphi 0, %s25
      %s29 = sphi 0, %s26
      %s30 = sphi 0, %s27
      %s31 = sphi 0, %s28
      %s47 = sphi 0, %s49
      %s50 = sphi 0, %s47
      %s51 = sphi 0, %s50
      %s67 = sphi 0, %s51
      %s73 = sphi 0, %s75
      %s76 = sphi 0, %s73
      %s77 = sphi 0, %s76
      %s93 = sphi 0, %s77
      %s99 = sphi 0, %s101
      %s102 = sphi 0, %s99
      %s103 = sphi 0, %s102
      %s119 = sphi 0, %s103
      %s129 = sphi 0, %s131
      %s132 = sphi 0, %s129
      %s133 = sphi 0, %s132
      %s149 = sphi 0, %s133
    $region4: #{multi_head_attention.5} parent=1 // loop_header_branch
      %19 = sbr.rel (%p17) target = $region8
    $region5: #{multi_head_attention.5} parent=1 // loop_body
      %s21 = ssub.s32 %s16, 1
      %s22 = ssub.s32 %s16, 2
      %s32 = sadd.s32 1, %s25
      %p33 = scmp.ge.s32.totalorder %s32, 1
      %s34 = scalar_select %p33, 0, %s32
      %s35 = sadd.s32 1, %s24
      %s36 = scalar_select %p33, %s35, %s24
      %p37 = scmp.ge.s32.totalorder %s36, 1
      %s38 = scalar_select %p37, 0, %s36
      %s39 = sadd.s32 1, %s23
      %s40 = scalar_select %p37, %s39, %s23
      %p41 = scmp.ge.s32.totalorder %s40, 2
      %s42 = scalar_select %p41, 0, %s40
      %s43 = ssub.s32 %s23, %s42
      %s44 = ssub.s32 %s24, %s38
      %s45 = sor.u32 %s43, %s44
      %p46 = scmp.eq.s32.totalorder %s45, 0
      %s48 = sadd.s32 %s47, 1
      %s49 = scalar_select %p46, %s47, %s48
      %p52 = pneg %p46
      %p53 = scmp.eq.s32.totalorder %s16, 1
      %p54 = por %p52, %p53
      %p55 = scmp.ne.s32.totalorder %s47, %s50
      %p56 = scmp.eq.s32.totalorder %s16, 0
      %p57 = por %p55, %p56
      %p58 = scmp.ne.s32.totalorder %s47, %s50
      %p59 = scmp.eq.s32.totalorder %s21, 1
      %p60 = por %p58, %p59
      %p61 = scmp.ne.s32.totalorder %s50, %s51
      %p62 = scmp.eq.s32.totalorder %s21, 0
      %p63 = por %p61, %p62
      %p64 = scmp.ne.s32.totalorder %s50, %s51
      %p65 = scmp.eq.s32.totalorder %s22, 1
      %p66 = por %p64, %p65
      %p68 = scmp.ne.s32.totalorder %s51, %s67
      %p69 = scmp.eq.s32.totalorder %s22, 0
      %p70 = por %p68, %p69
      %s71 = ssub.s32 %s25, %s34
      %p72 = scmp.eq.s32.totalorder %s71, 0
      %s74 = sadd.s32 %s73, 1
      %s75 = scalar_select %p72, %s73, %s74
      %p78 = pneg %p72
      %p79 = scmp.eq.s32.totalorder %s16, 1
      %p80 = por %p78, %p79
      %p81 = scmp.ne.s32.totalorder %s73, %s76
      %p82 = scmp.eq.s32.totalorder %s16, 0
      %p83 = por %p81, %p82
      %p84 = scmp.ne.s32.totalorder %s73, %s76
      %p85 = scmp.eq.s32.totalorder %s21, 1
      %p86 = por %p84, %p85
      %p87 = scmp.ne.s32.totalorder %s76, %s77
      %p88 = scmp.eq.s32.totalorder %s21, 0
      %p89 = por %p87, %p88
      %p90 = scmp.ne.s32.totalorder %s76, %s77
      %p91 = scmp.eq.s32.totalorder %s22, 1
      %p92 = por %p90, %p91
      %p94 = scmp.ne.s32.totalorder %s77, %s93
      %p95 = scmp.eq.s32.totalorder %s22, 0
      %p96 = por %p94, %p95
      %s97 = ssub.s32 %s25, %s34
      %p98 = scmp.eq.s32.totalorder %s97, 0
      %s100 = sadd.s32 %s99, 1
      %s101 = scalar_select %p98, %s99, %s100
      %p104 = pneg %p98
      %p105 = scmp.eq.s32.totalorder %s16, 1
      %p106 = por %p104, %p105
      %p107 = scmp.ne.s32.totalorder %s99, %s102
      %p108 = scmp.eq.s32.totalorder %s16, 0
      %p109 = por %p107, %p108
      %p110 = scmp.ne.s32.totalorder %s99, %s102
      %p111 = scmp.eq.s32.totalorder %s21, 1
      %p112 = por %p110, %p111
      %p113 = scmp.ne.s32.totalorder %s102, %s103
      %p114 = scmp.eq.s32.totalorder %s21, 0
      %p115 = por %p113, %p114
      %p116 = scmp.ne.s32.totalorder %s102, %s103
      %p117 = scmp.eq.s32.totalorder %s22, 1
      %p118 = por %p116, %p117
      %p120 = scmp.ne.s32.totalorder %s103, %s119
      %p121 = scmp.eq.s32.totalorder %s22, 0
      %p122 = por %p120, %p121
      %s123 = ssub.s32 %s23, %s42
      %s124 = ssub.s32 %s24, %s38
      %s125 = sor.u32 %s123, %s124
      %s126 = ssub.s32 %s25, %s34
      %s127 = sor.u32 %s125, %s126
      %p128 = scmp.eq.s32.totalorder %s127, 0
      %s130 = sadd.s32 %s129, 1
      %s131 = scalar_select %p128, %s129, %s130
      %p134 = pneg %p128
      %p135 = scmp.eq.s32.totalorder %s16, 1
      %p136 = por %p134, %p135
      %p137 = scmp.ne.s32.totalorder %s129, %s132
      %p138 = scmp.eq.s32.totalorder %s16, 0
      %p139 = por %p137, %p138
      %p140 = scmp.ne.s32.totalorder %s129, %s132
      %p141 = scmp.eq.s32.totalorder %s21, 1
      %p142 = por %p140, %p141
      %p143 = scmp.ne.s32.totalorder %s132, %s133
      %p144 = scmp.eq.s32.totalorder %s21, 0
      %p145 = por %p143, %p144
      %p146 = scmp.ne.s32.totalorder %s132, %s133
      %p147 = scmp.eq.s32.totalorder %s22, 1
      %p148 = por %p146, %p147
      %p150 = scmp.ne.s32.totalorder %s133, %s149
      %p151 = scmp.eq.s32.totalorder %s22, 0
      %p152 = por %p150, %p151
      %p153 = scmp.le.s32.totalorder 1, %s16
      %p154 = scmp.lt.s32.totalorder %s16, 3
      %p155 = pnand %p153, %p154
      %p156 = pneg %p155
      // Predicated region
      $region9: #{multi_head_attention.5} parent=5 // pred_check
        _
      $region10: #{multi_head_attention.5} parent=5 // pred_check_branch
        %158 = sbr.rel (%p155) target = $region12
      $region11: #{multi_head_attention.5} parent=5 // pred_region
        %s159 = ssub.s32 %s16, 1
        // Predicated region
        $region13: #{multi_head_attention.5} parent=11 // pred_check
          %p160 = pneg %p89
        $region14: #{multi_head_attention.5} parent=11 // pred_check_branch
          %162 = sbr.rel (%p160) target = $region16
        $region15: #{multi_head_attention.5} parent=11 // pred_region
          %s164 = ssub.s32 256, 256
          %165 = vsyncadd [#allocation6], %s164
          %s166 = smul.addr %s28, 64
          %s167 = scalar_lea.hbm %s1, %s166
          %s168 = sshll.u32 [#allocation5], 4
          %s169 = int_to_ptr.vmem [resolvable:$true] %s168
          %174 = dma.hbm_to_vmem [thread:$0]  %s167, 256, %s169, [#allocation6], 64, 64, 4
        $region16: #{multi_head_attention.5} parent=11 // pred_fallthru
          _
        // Predicated region
        $region17: #{multi_head_attention.5} parent=11 // pred_check
          %p175 = pneg %p115
        $region18: #{multi_head_attention.5} parent=11 // pred_check_branch
          %177 = sbr.rel (%p175) target = $region20
        $region19: #{multi_head_attention.5} parent=11 // pred_region
          %s179 = ssub.s32 16, 16
          %180 = vsyncadd [#allocation6], %s179
          %s181 = smul.addr %s28, 16
          %s182 = scalar_lea.hbm %s2, %s181
          %s184 = sshll.u32 [#allocation7], 4
          %s185 = int_to_ptr.vmem [resolvable:$true] %s184
          %187 = dma.hbm_to_vmem [thread:$0]  %s182, 16, %s185, [#allocation6]
        $region20: #{multi_head_attention.5} parent=11 // pred_fallthru
          _
      $region12: #{multi_head_attention.5} parent=5 // pred_fallthru
        _
      %p188 = scmp.lt.s32.totalorder %s16, 2
      // Predicated region
      $region21: #{multi_head_attention.5} parent=5 // pred_check
        %p189 = pneg %p188
      $region22: #{multi_head_attention.5} parent=5 // pred_check_branch
        %191 = sbr.rel (%p189) target = $region24
      $region23: #{multi_head_attention.5} parent=5 // pred_region
        // Predicated region
        $region25: #{multi_head_attention.5} parent=23 // pred_check
          %p192 = pneg %p57
        $region26: #{multi_head_attention.5} parent=23 // pred_check_branch
          %194 = sbr.rel (%p192) target = $region28
        $region27: #{multi_head_attention.5} parent=23 // pred_region
          %s195 = sand.u32 %s47, 1
          %s196 = scalar_lea.sflag [#allocation3], %s195
          %s197 = sand.u32 %s47, 1
          %s198 = smul.addr %s197, 4
          %s199 = scalar_lea.vmem [#allocation2], %s198
          %s201 = ssub.s32 64, 64
          %202 = vsyncadd %s196, %s201
          %s203 = sadd.s32 %s24, %s23
          %s204 = smul.addr %s203, 64
          %s205 = scalar_lea.hbm %s0, %s204
          %s207 = sshll.u32 %s199, 4
          %s208 = int_to_ptr.vmem [resolvable:$true] %s207
          %210 = dma.hbm_to_vmem [thread:$0]  %s205, 64, %s208, %s196
        $region28: #{multi_head_attention.5} parent=23 // pred_fallthru
          _
      $region24: #{multi_head_attention.5} parent=5 // pred_fallthru
        _
      %p211 = scmp.le.s32.totalorder 1, %s16
      %p212 = scmp.lt.s32.totalorder %s16, 3
      %p213 = pnand %p211, %p212
      %p214 = pneg %p213
      // Predicated region
      $region29: #{multi_head_attention.5} parent=5 // pred_check
        _
      $region30: #{multi_head_attention.5} parent=5 // pred_check_branch
        %216 = sbr.rel (%p213) target = $region32
      $region31: #{multi_head_attention.5} parent=5 // pred_region
        %s217 = ssub.s32 %s16, 1
        %s218 = sand.u32 %s50, 1
        %s219 = scalar_lea.sflag [#allocation3], %s218
        %s220 = sand.u32 %s50, 1
        %s221 = smul.addr %s220, 4
        %s222 = scalar_lea.vmem [#allocation2], %s221
        // Predicated region
        $region33: #{multi_head_attention.5} parent=31 // pred_check
          %p223 = pneg %p63
        $region34: #{multi_head_attention.5} parent=31 // pred_check_branch
          %225 = sbr.rel (%p223) target = $region36
        $region35: #{multi_head_attention.5} parent=31 // pred_region
          %226 = dma.done %s219, 64
        $region36: #{multi_head_attention.5} parent=31 // pred_fallthru
          _
        // Predicated region
        $region37: #{multi_head_attention.5} parent=31 // pred_check
          %p227 = pneg %p89
        $region38: #{multi_head_attention.5} parent=31 // pred_check_branch
          %229 = sbr.rel (%p227) target = $region40
        $region39: #{multi_head_attention.5} parent=31 // pred_region
          %230 = dma.done [#allocation6], 256
        $region40: #{multi_head_attention.5} parent=31 // pred_fallthru
          _
        // Predicated region
        $region41: #{multi_head_attention.5} parent=31 // pred_check
          %p231 = pneg %p115
        $region42: #{multi_head_attention.5} parent=31 // pred_check_branch
          %233 = sbr.rel (%p231) target = $region44
        $region43: #{multi_head_attention.5} parent=31 // pred_region
          %234 = dma.done [#allocation6], 16
        $region44: #{multi_head_attention.5} parent=31 // pred_fallthru
          _
        %s235 = sand.u32 %s50, 1
        %s236 = scalar_lea.sflag [#allocation3], %s235
        %s237 = sand.u32 %s50, 1
        %s238 = smul.addr %s237, 4
        %s239 = scalar_lea.vmem [#allocation2], %s238
        %p240 = pneg %p63
        %p241 = pneg %p60
        %p242 = pneg %p89
        %p243 = pneg %p86
        %p244 = pneg %p115
        %p245 = pneg %p112
        %p246 = pneg %p145
        %p247 = pneg %p142
        %s248 = sand.u32 %s132, 1
        %s249 = scalar_lea.sflag [#allocation4], %s248
        %s250 = sand.u32 %s132, 1
        %s251 = smul.addr %s250, 8
        %s252 = scalar_lea.vmem [#allocation8], %s251
        %v254 = vld [vmem:[%s222] sm:$0xf]
        %v255 = vld [vmem:[#allocation5] sm:$0xf]
        %v256 = vld [vmem:[#allocation5 + $0x4] sm:$0xf]
        %v257 = vld [vmem:[#allocation5 + $0x8] sm:$0xf]
        %v258 = vld [vmem:[#allocation5 + $0xc] sm:$0xf]
        %v259 = vld [vmem:[#allocation7] sm:$0x1]
        %v261 = vlaneseq
        %v262 = vshrl.u32 %v261, 7
        %v263 = vsub.s32 0, %v262
        %v264 = vrot.slane %v259, %v263
        %v270 = vunpack.c.l.b16 %v255
        %v271 = vunpack.c.l.b16 %v256
        %v272 = vunpack.c.l.b16 %v257
        %v273 = vunpack.c.l.b16 %v258
        %v274 = vpack.c.b16 %v271, %v270
        %v275 = vpack.c.b16 %v273, %v272
        %vm278 = vcmask 261120
        %v280 = vsel %vm278, %v254, 0
        %282 = vmatprep.subr.bf16.mxu0 0
        %283 = vmatpush1.bf16.msra.mxu0 %v274
        %284 = vmatprep.subr.bf16.mxu0 0
        %285 = vmatpush1.bf16.msra.mxu0 %v275
        %286 = vmatprep.subr.bf16.mxu0 0
        %287 = vmatpush1.bf16.msra.mxu0 0
        %288 = vmatprep.subr.bf16.mxu0 0
        %289 = vmatpush1.bf16.msra.mxu0 0
        %290 = vmatprep.subr.bf16.mxu0 0
        %291 = vmatpush1.bf16.msra.mxu0 0
        %292 = vmatprep.subr.bf16.mxu0 0
        %293 = vmatpush1.bf16.msra.mxu0 0
        %294 = vmatprep.subr.bf16.mxu0 0
        %295 = vmatpush1.bf16.msra.mxu0 0
        %296 = vmatprep.subr.bf16.mxu0 0
        %297 = vmatpush1.bf16.msra.mxu0 0
        %298 = vmatprep.subr.bf16.mxu0 0
        %299 = vmatpush1.bf16.msra.mxu0 0
        %300 = vmatprep.subr.bf16.mxu0 0
        %301 = vmatpush1.bf16.msra.mxu0 0
        %302 = vmatprep.subr.bf16.mxu0 0
        %303 = vmatpush1.bf16.msra.mxu0 0
        %304 = vmatprep.subr.bf16.mxu0 0
        %305 = vmatpush1.bf16.msra.mxu0 0
        %306 = vmatprep.subr.bf16.mxu0 0
        %307 = vmatpush1.bf16.msra.mxu0 0
        %308 = vmatprep.subr.bf16.mxu0 0
        %309 = vmatpush1.bf16.msra.mxu0 0
        %310 = vmatprep.subr.bf16.mxu0 0
        %311 = vmatpush1.bf16.msra.mxu0 0
        %312 = vmatprep.subr.bf16.mxu0 0
        %313 = vmatpush1.bf16.msra.mxu0 0
        %314 = vmatprep.mubr.bf16.mxu0 0
        %315 = vmatmul.mubr.bf16.gmra.mrb[0].mxu0 %v280
        %v316 = vpop.f32.mrb[0].mxu0
        %v317 = vadd.f32 %v264, %v316
        %v318 = vpop.f32.mrb[0].mxu0
        %v319 = vpop.f32.mrb[0].mxu0
        %v320 = vpop.f32.mrb[0].mxu0
        %321 = vdwg.mxu0
        %322 = vst [vmem:[%s252] sm:$0xff] %v317
        %s323 = sand.u32 %s132, 1
        %s324 = scalar_lea.sflag [#allocation4], %s323
        %s325 = sand.u32 %s132, 1
        %s326 = smul.addr %s325, 8
        %s327 = scalar_lea.vmem [#allocation8], %s326
        // Predicated region
        $region45: #{multi_head_attention.5} parent=31 // pred_check
          %p328 = pneg %p142
        $region46: #{multi_head_attention.5} parent=31 // pred_check_branch
          %330 = sbr.rel (%p328) target = $region48
        $region47: #{multi_head_attention.5} parent=31 // pred_region
          %s332 = ssub.s32 128, 128
          %333 = vsyncadd %s324, %s332
          %s334 = sadd.s32 %s28, %s27
          %s335 = sadd.s32 %s334, %s26
          %s336 = smul.addr %s335, 128
          %s337 = scalar_lea.hbm %s3, %s336
          %s339 = sshll.u32 %s327, 4
          %s340 = int_to_ptr.vmem [resolvable:$true] %s339
          %342 = dma.vmem_to_hbm [thread:$0]  %s340, 128, %s337, %s324
        $region48: #{multi_head_attention.5} parent=31 // pred_fallthru
          _
      $region32: #{multi_head_attention.5} parent=5 // pred_fallthru
        _
      %p343 = scmp.le.s32.totalorder 2, %s16
      // Predicated region
      $region49: #{multi_head_attention.5} parent=5 // pred_check
        %p344 = pneg %p343
      $region50: #{multi_head_attention.5} parent=5 // pred_check_branch
        %346 = sbr.rel (%p344) target = $region52
      $region51: #{multi_head_attention.5} parent=5 // pred_region
        %s347 = ssub.s32 %s16, 2
        // Predicated region
        $region53: #{multi_head_attention.5} parent=51 // pred_check
          %p348 = pneg %p148
        $region54: #{multi_head_attention.5} parent=51 // pred_check_branch
          %350 = sbr.rel (%p348) target = $region56
        $region55: #{multi_head_attention.5} parent=51 // pred_region
          %s351 = sand.u32 %s133, 1
          %s352 = scalar_lea.sflag [#allocation4], %s351
          %s353 = sand.u32 %s133, 1
          %s354 = smul.addr %s353, 8
          %s355 = scalar_lea.vmem [#allocation8], %s354
          %356 = dma.done %s352, 128
        $region56: #{multi_head_attention.5} parent=51 // pred_fallthru
          _
      $region52: #{multi_head_attention.5} parent=5 // pred_fallthru
        _
    $region6: #{multi_head_attention.5} parent=1 // loop_footer
      %s20 = sadd.s32 1, %s16
    $region7: #{multi_head_attention.5} parent=1 // loop_footer_branch
      %15 = sbr.rel target = $region3
    $region8: #{multi_head_attention.5} parent=1 // loop_exit
      _
    %357 = vsyncpa [#allocation3], 1
    %s358 = scalar_lea.sflag [#allocation3], 1
    %359 = vsyncpa %s358, 1
    %360 = vsyncpa [#allocation6], 1
    %361 = vsyncpa [#allocation4], 1
    %s362 = scalar_lea.sflag [#allocation4], 1
    %363 = vsyncpa %s362, 1

</llo_original>
